<compile_context>
chip_gen: v5e
topology: v5e:2x2
jax: 0.10.0
libtpu: 0.0.40
codegen_flags: <defaults>
</compile_context>

<pallas_src>
import math

import jax
import jax.numpy as jnp
from jax.experimental import pallas as pl
from jax.experimental.pallas import tpu as pltpu


def gru_kernel(x_ref, h0_ref, wih_ref, whh_ref, bp_ref, bhn_ref,
               wlin_ref, blin_ref, prob_ref, hout_ref, h_scr):
    """One (batch-block, T-chunk) grid step of the GRU recurrence.

    x_ref    : (T_chunk, B_blk, D_pad)  bf16  time-major input chunk
    h0_ref   : (B_blk, H_pad)           f32   initial hidden (batch block)
    wih_ref  : (D_pad, 3*H_pad)         bf16  [W_ir | W_iz | W_in]
    whh_ref  : (H_pad, 3*H_pad)         bf16  [W_hr | W_hz | W_hn]
    bp_ref   : (1, 3*H_pad)             f32   [b_ir+b_hr | b_iz+b_hz | b_in]
    bhn_ref  : (1, H_pad)               f32   b_hn
    wlin_ref : (H_pad, C_pad)           bf16  classifier weight
    blin_ref : (1, C_pad)               f32   classifier bias
    prob_ref : (B_blk, C_pad)           f32   sigmoid(linear(h_T))   [out]
    hout_ref : (B_blk, H_pad)           f32   final hidden           [out]
    h_scr    : (B_blk, H_pad)           f32   hidden carried across T chunks
    """
    t_idx = pl.program_id(1)
    n_t = pl.num_programs(1)
    T_chunk, B_blk, D_pad = x_ref.shape
    H = h_scr.shape[-1]

    @pl.when(t_idx == 0)
    def _():
        h_scr[...] = h0_ref[...]

    # Hoisted input projection for the whole chunk: one MXU-friendly matmul.
    x_flat = x_ref[...].reshape(T_chunk * B_blk, D_pad)          # free (B_blk=16)
    p = jnp.dot(x_flat, wih_ref[...], preferred_element_type=jnp.float32)
    p = p + bp_ref[...]                                          # folded biases

    u_cat = whh_ref[...]
    b_hn = jnp.broadcast_to(bhn_ref[...], (B_blk, H))            # hoisted bcast

    h = h_scr[...]
    # Fully unrolled recurrence over the chunk (T_chunk is small & static).
    for t in range(T_chunk):
        p_t = p[t * B_blk:(t + 1) * B_blk, :]                    # (B_blk, 3H)
        g = jnp.dot(h.astype(u_cat.dtype), u_cat,
                    preferred_element_type=jnp.float32)          # (B_blk, 3H)
        r = jax.nn.sigmoid(p_t[:, 0:H] + g[:, 0:H])
        z = jax.nn.sigmoid(p_t[:, H:2 * H] + g[:, H:2 * H])
        n = jnp.tanh(p_t[:, 2 * H:3 * H] + r * (g[:, 2 * H:3 * H] + b_hn))
        h = (1.0 - z) * n + z * h
    h_scr[...] = h

    @pl.when(t_idx == n_t - 1)
    def _():
        hout_ref[...] = h
        logits = jnp.dot(h.astype(wlin_ref.dtype), wlin_ref[...],
                         preferred_element_type=jnp.float32) + blin_ref[...]
        prob_ref[...] = jax.nn.sigmoid(logits)


def _round_up(v, m):
    return (v + m - 1) // m * m


def _largest_divisor_leq(n, cap):
    for c in range(min(cap, n), 0, -1):
        if n % c == 0:
            return c
    return 1


def gru_forward(x, hidden, params, *, chunk_cap=8):
    """PyTorch-equivalent forward.  x:(B, T, D_in), hidden:(1, B, H)."""
    B, T, D_in = x.shape
    H = hidden.shape[-1]
    C = params["w_lin"].shape[0]

    f32, bf16 = jnp.float32, jnp.bfloat16

    B_BLK = 16                                  # bf16 sublane tile; megacore split
    B_pad = _round_up(max(B, 1), B_BLK)
    D_pad = _round_up(D_in, 128)
    H_pad = _round_up(H, 128)
    C_pad = _round_up(C, 128)
    T_chunk = _largest_divisor_leq(T, chunk_cap)
    n_b = B_pad // B_BLK
    n_t = T // T_chunk

    # ---- pack / pad parameters (PyTorch layouts -> kernel layouts) ----------
    w_ih, w_hh = params["w_ih"], params["w_hh"]            # (3H, D_in), (3H, H)
    b_ih, b_hh = params["b_ih"], params["b_hh"]            # (3H,), (3H,)
    w_lin, b_lin = params["w_lin"], params["b_lin"]        # (C, H), (C,)

    def pad2(a, r, c):
        return jnp.pad(a, ((0, r - a.shape[0]), (0, c - a.shape[1])))

    def pad1(v):
        return jnp.pad(v, (0, H_pad - H))

    wih_cat = jnp.concatenate(
        [pad2(w_ih[g * H:(g + 1) * H].T, D_pad, H_pad) for g in range(3)],
        axis=1).astype(bf16)                               # (D_pad, 3*H_pad)
    whh_cat = jnp.concatenate(
        [pad2(w_hh[g * H:(g + 1) * H].T, H_pad, H_pad) for g in range(3)],
        axis=1).astype(bf16)                               # (H_pad, 3*H_pad)
    b_p = jnp.concatenate(
        [pad1(b_ih[0:H] + b_hh[0:H]),                      # r: both biases fold
         pad1(b_ih[H:2 * H] + b_hh[H:2 * H]),              # z: both biases fold
         pad1(b_ih[2 * H:3 * H])],                         # n: input bias only
        axis=0).reshape(1, 3 * H_pad).astype(f32)
    b_hn = pad1(b_hh[2 * H:3 * H]).reshape(1, H_pad).astype(f32)
    wlin_p = pad2(w_lin.T, H_pad, C_pad).astype(bf16)      # (H_pad, C_pad)
    blin_p = jnp.pad(b_lin, (0, C_pad - C)).reshape(1, C_pad).astype(f32)

    # ---- activations: time-major, padded, bf16 matmul operands --------------
    # TODO(synk): for very long WSI sequences, feed x batch-first through a
    # separate projection kernel to avoid this (XLA-fused) transpose+pad pass.
    x_tm = jnp.transpose(x, (1, 0, 2))
    x_tm = jnp.pad(x_tm, ((0, 0), (0, B_pad - B), (0, D_pad - D_in))).astype(bf16)
    h0 = jnp.pad(hidden.reshape(B, H).astype(f32),
                 ((0, B_pad - B), (0, H_pad - H)))

    # ---- explicit VMEM budget (v7x has only 64 MiB / TC) --------------------
    est = (2 * T_chunk * B_BLK * D_pad * 2                         # x chunk x2
           + 2 * ((D_pad + H_pad) * 3 * H_pad + H_pad * C_pad) * 2  # bf16 weights
           + 2 * (3 * H_pad + H_pad + C_pad) * 4                    # biases
           + 2 * B_BLK * H_pad * 4                                  # h0 block
           + 2 * (B_BLK * C_pad + B_BLK * H_pad) * 4                # outputs
           + B_BLK * H_pad * 4                                      # scratch
           + (2 << 20))                                             # margin
    vmem_limit = int(min(max(est, 32 << 20), 48 << 20))

    prob, h_out = pl.pallas_call(
        gru_kernel,
        grid_spec=pltpu.PrefetchScalarGridSpec(
            num_scalar_prefetch=0,
            grid=(n_b, n_t),
            in_specs=[
                pl.BlockSpec((T_chunk, B_BLK, D_pad), lambda b, t: (t, b, 0)),
                pl.BlockSpec((B_BLK, H_pad), lambda b, t: (b, 0)),
                pl.BlockSpec((D_pad, 3 * H_pad), lambda b, t: (0, 0)),   # resident
                pl.BlockSpec((H_pad, 3 * H_pad), lambda b, t: (0, 0)),   # resident
                pl.BlockSpec((1, 3 * H_pad), lambda b, t: (0, 0)),
                pl.BlockSpec((1, H_pad), lambda b, t: (0, 0)),
                pl.BlockSpec((H_pad, C_pad), lambda b, t: (0, 0)),
                pl.BlockSpec((1, C_pad), lambda b, t: (0, 0)),
            ],
            out_specs=(
                pl.BlockSpec((B_BLK, C_pad), lambda b, t: (b, 0)),
                pl.BlockSpec((B_BLK, H_pad), lambda b, t: (b, 0)),
            ),
            scratch_shapes=[pltpu.VMEM((B_BLK, H_pad), jnp.float32)],
        ),
        out_shape=(jax.ShapeDtypeStruct((B_pad, C_pad), jnp.float32),
                   jax.ShapeDtypeStruct((B_pad, H_pad), jnp.float32)),
        compiler_params=pltpu.CompilerParams(
            dimension_semantics=("parallel", "arbitrary"),
            vmem_limit_bytes=vmem_limit),
    )(x_tm, h0, wih_cat, whh_cat, b_p, b_hn, wlin_p, blin_p)

    preds = prob[:B, 0]                        # == sigmoid(predictions)[:, -1, 0]
    new_hidden = h_out[:B, :H][None, :, :]     # (n_layers=1, B, H)
    return preds, new_hidden


def init_params(key, input_dim, hidden_dim, cls_num):
    """PyTorch nn.GRU / nn.Linear layouts (gate order r, z, n)."""
    k = 1.0 / math.sqrt(hidden_dim)
    ks = jax.random.split(key, 6)
    u = lambda kk, shape: jax.random.uniform(kk, shape, minval=-k, maxval=k,
                                             dtype=jnp.float32)
    return dict(
        w_ih=u(ks[0], (3 * hidden_dim, input_dim)),
        w_hh=u(ks[1], (3 * hidden_dim, hidden_dim)),
        b_ih=u(ks[2], (3 * hidden_dim,)),
        b_hh=u(ks[3], (3 * hidden_dim,)),
        w_lin=u(ks[4], (cls_num, hidden_dim)),
        b_lin=u(ks[5], (cls_num,)),
    )


def gru_reference(x, hidden, params):
    """Pure-JAX reference with the same dtype policy (bf16 operands, f32 acc)."""
    B, T, _ = x.shape
    H = hidden.shape[-1]
    bf16, f32 = jnp.bfloat16, jnp.float32
    w_ih, w_hh = params["w_ih"], params["w_hh"]
    b_ih, b_hh = params["b_ih"], params["b_hh"]
    Wi = [w_ih[g * H:(g + 1) * H].T.astype(bf16) for g in range(3)]
    Wh = [w_hh[g * H:(g + 1) * H].T.astype(bf16) for g in range(3)]
    bi = [b_ih[g * H:(g + 1) * H].astype(f32) for g in range(3)]
    bh = [b_hh[g * H:(g + 1) * H].astype(f32) for g in range(3)]
    h = hidden.reshape(B, H).astype(f32)
    for t in range(T):
        x_t = x[:, t, :].astype(bf16)
        hb = h.astype(bf16)
        r = jax.nn.sigmoid(jnp.dot(x_t, Wi[0], preferred_element_type=f32) + bi[0]
                           + jnp.dot(hb, Wh[0], preferred_element_type=f32) + bh[0])
        z = jax.nn.sigmoid(jnp.dot(x_t, Wi[1], preferred_element_type=f32) + bi[1]
                           + jnp.dot(hb, Wh[1], preferred_element_type=f32) + bh[1])
        n = jnp.tanh(jnp.dot(x_t, Wi[2], preferred_element_type=f32) + bi[2]
                     + r * (jnp.dot(hb, Wh[2], preferred_element_type=f32) + bh[2]))
        h = (1.0 - z) * n + z * h
    logits = jnp.dot(h.astype(bf16), params["w_lin"].T.astype(bf16),
                     preferred_element_type=f32) + params["b_lin"].astype(f32)
    preds = jax.nn.sigmoid(logits)[:, 0]
    return preds, h[None, :, :]


if __name__ == "__main__":
    # Small shapes consistent with the module's forward:
    # batch=2, seq=16 (2 streamed T-chunks), input_dim=32, hidden_dim=32, cls=1.
    B, T, D_IN, H, C = 2, 16, 32, 32, 1

    key = jax.random.PRNGKey(0)
    k_x, k_p = jax.random.split(key)
    x = jax.random.normal(k_x, (B, T, D_IN), dtype=jnp.float32)
    hidden0 = jnp.zeros((1, B, H), dtype=jnp.float32)          # init_hidden()
    params = init_params(k_p, D_IN, H, C)

    preds, hidden = gru_forward(x, hidden0, params)
    preds = jax.block_until_ready(preds)
    hidden = jax.block_until_ready(hidden)

    # Correctness check against a pure-JAX reference (same dtype policy).
    preds_ref, hidden_ref = gru_reference(x, hidden0, params)
    assert preds.shape == (B,) and hidden.shape == (1, B, H)
    assert jnp.allclose(preds, preds_ref, atol=2e-3, rtol=2e-3)
    assert jnp.allclose(hidden, hidden_ref, atol=2e-3, rtol=2e-3)

    print("KERNEL_OK")
</pallas_src>

<mosaic_0001>
module attributes {stable_mosaic.version = 11 : i64} {
  func.func @gru_kernel(%arg0: i32, %arg1: i32, %arg2: memref<8x16x128xbf16, #tpu.memory_space<vmem>>, %arg3: memref<16x128xf32, #tpu.memory_space<vmem>>, %arg4: memref<128x384xbf16, #tpu.memory_space<vmem>>, %arg5: memref<128x384xbf16, #tpu.memory_space<vmem>>, %arg6: memref<1x384xf32, #tpu.memory_space<vmem>>, %arg7: memref<1x128xf32, #tpu.memory_space<vmem>>, %arg8: memref<128x128xbf16, #tpu.memory_space<vmem>>, %arg9: memref<1x128xf32, #tpu.memory_space<vmem>>, %arg10: memref<16x128xf32, #tpu.memory_space<vmem>>, %arg11: memref<16x128xf32, #tpu.memory_space<vmem>>, %arg12: memref<16x128xf32, #tpu.memory_space<vmem>>) attributes {dimension_semantics = [#tpu.dimension_semantics<parallel>, #tpu.dimension_semantics<arbitrary>], iteration_bounds = array<i64: 1, 2>, scalar_prefetch = 0 : i64, scratch_operands = 1 : i64, tpu.core_type = #tpu.core_type<tc>, window_params = [{transform_indices = @transform_0, window_bounds = array<i64: 8, 16, 128>}, {transform_indices = @transform_1, window_bounds = array<i64: 16, 128>}, {pipeline_mode = #tpu.pipeline_mode<synchronous>, transform_indices = @transform_2, window_bounds = array<i64: 128, 384>}, {pipeline_mode = #tpu.pipeline_mode<synchronous>, transform_indices = @transform_3, window_bounds = array<i64: 128, 384>}, {pipeline_mode = #tpu.pipeline_mode<synchronous>, transform_indices = @transform_4, window_bounds = array<i64: 1, 384>}, {pipeline_mode = #tpu.pipeline_mode<synchronous>, transform_indices = @transform_5, window_bounds = array<i64: 1, 128>}, {pipeline_mode = #tpu.pipeline_mode<synchronous>, transform_indices = @transform_6, window_bounds = array<i64: 128, 128>}, {pipeline_mode = #tpu.pipeline_mode<synchronous>, transform_indices = @transform_7, window_bounds = array<i64: 1, 128>}, {transform_indices = @transform_8, window_bounds = array<i64: 16, 128>}, {transform_indices = @transform_9, window_bounds = array<i64: 16, 128>}]} {
    %c0_i32 = arith.constant 0 : i32
    %0 = arith.cmpi eq, %arg1, %c0_i32 : i32
    %1 = arith.extui %0 : i1 to i32
    %c0_i32_0 = arith.constant 0 : i32
    %2 = arith.cmpi ne, %1, %c0_i32_0 : i32
    scf.if %2 {
      %c0_48 = arith.constant 0 : index
      %c0_49 = arith.constant 0 : index
      %259 = vector.load %arg3[%c0_48, %c0_49] : memref<16x128xf32, #tpu.memory_space<vmem>>, vector<16x128xf32>
      %c0_50 = arith.constant 0 : index
      %c0_51 = arith.constant 0 : index
      %260 = vector.load %arg12[%c0_50, %c0_51] : memref<16x128xf32, #tpu.memory_space<vmem>>, vector<16x128xf32>
      tpu.vector_store %arg12[%c0_50, %c0_51], %259 {strides = array<i32>} : memref<16x128xf32, #tpu.memory_space<vmem>>, vector<16x128xf32>,
    } else {
    }
    %c0 = arith.constant 0 : index
    %c0_1 = arith.constant 0 : index
    %c0_2 = arith.constant 0 : index
    %3 = vector.load %arg2[%c0, %c0_1, %c0_2] : memref<8x16x128xbf16, #tpu.memory_space<vmem>>, vector<8x16x128xbf16>
    %4 = vector.shape_cast %3 : vector<8x16x128xbf16> to vector<128x128xbf16>
    %c0_3 = arith.constant 0 : index
    %c0_4 = arith.constant 0 : index
    %5 = vector.load %arg4[%c0_3, %c0_4] : memref<128x384xbf16, #tpu.memory_space<vmem>>, vector<128x384xbf16>
    %cst = arith.constant dense<0.000000e+00> : vector<128x384xf32>
    %6 = tpu.matmul %4, %5, %cst {dimension_numbers = #tpu.dot_dimension_numbers<[1], [0], [0], [1], [0, 0, 1, 1], [], []>} : vector<128x128xbf16>, vector<128x384xbf16>, vector<128x384xf32> -> vector<128x384xf32>
    %c0_5 = arith.constant 0 : index
    %c0_6 = arith.constant 0 : index
    %7 = vector.load %arg6[%c0_5, %c0_6] : memref<1x384xf32, #tpu.memory_space<vmem>>, vector<1x384xf32>
    %8 = vector.broadcast %7 : vector<1x384xf32> to vector<128x384xf32>
    %9 = arith.addf %6, %8 : vector<128x384xf32>
    %c0_7 = arith.constant 0 : index
    %c0_8 = arith.constant 0 : index
    %10 = vector.load %arg5[%c0_7, %c0_8] : memref<128x384xbf16, #tpu.memory_space<vmem>>, vector<128x384xbf16>
    %c0_9 = arith.constant 0 : index
    %c0_10 = arith.constant 0 : index
    %11 = vector.load %arg7[%c0_9, %c0_10] : memref<1x128xf32, #tpu.memory_space<vmem>>, vector<1x128xf32>
    %12 = vector.shape_cast %11 : vector<1x128xf32> to vector<1x128xf32>
    %13 = vector.broadcast %12 : vector<1x128xf32> to vector<16x128xf32>
    %c0_11 = arith.constant 0 : index
    %c0_12 = arith.constant 0 : index
    %14 = vector.load %arg12[%c0_11, %c0_12] : memref<16x128xf32, #tpu.memory_space<vmem>>, vector<16x128xf32>
    %15 = vector.extract_strided_slice %9 {offsets = [0, 0], sizes = [16, 384], strides = [1, 1]} : vector<128x384xf32> to vector<16x384xf32>
    %16 = arith.truncf %14 : vector<16x128xf32> to vector<16x128xbf16>
    %cst_13 = arith.constant dense<0.000000e+00> : vector<16x384xf32>
    %17 = tpu.matmul %16, %10, %cst_13 {dimension_numbers = #tpu.dot_dimension_numbers<[1], [0], [0], [1], [0, 0, 1, 1], [], []>} : vector<16x128xbf16>, vector<128x384xbf16>, vector<16x384xf32> -> vector<16x384xf32>
    %18 = vector.extract_strided_slice %15 {offsets = [0, 0], sizes = [16, 128], strides = [1, 1]} : vector<16x384xf32> to vector<16x128xf32>
    %19 = vector.extract_strided_slice %17 {offsets = [0, 0], sizes = [16, 128], strides = [1, 1]} : vector<16x384xf32> to vector<16x128xf32>
    %20 = arith.addf %18, %19 : vector<16x128xf32>
    %21 = arith.negf %20 : vector<16x128xf32>
    %22 = math.exp %21 : vector<16x128xf32>
    %cst_14 = arith.constant 1.000000e+00 : f32
    %23 = vector.broadcast %cst_14 : f32 to vector<16x128xf32>
    %24 = arith.addf %23, %22 : vector<16x128xf32>
    %25 = arith.divf %23, %24 : vector<16x128xf32>
    %26 = vector.extract_strided_slice %15 {offsets = [0, 128], sizes = [16, 128], strides = [1, 1]} : vector<16x384xf32> to vector<16x128xf32>
    %27 = vector.extract_strided_slice %17 {offsets = [0, 128], sizes = [16, 128], strides = [1, 1]} : vector<16x384xf32> to vector<16x128xf32>
    %28 = arith.addf %26, %27 : vector<16x128xf32>
    %29 = arith.negf %28 : vector<16x128xf32>
    %30 = math.exp %29 : vector<16x128xf32>
    %cst_15 = arith.constant 1.000000e+00 : f32
    %31 = vector.broadcast %cst_15 : f32 to vector<16x128xf32>
    %32 = arith.addf %31, %30 : vector<16x128xf32>
    %33 = arith.divf %31, %32 : vector<16x128xf32>
    %34 = vector.extract_strided_slice %15 {offsets = [0, 256], sizes = [16, 128], strides = [1, 1]} : vector<16x384xf32> to vector<16x128xf32>
    %35 = vector.extract_strided_slice %17 {offsets = [0, 256], sizes = [16, 128], strides = [1, 1]} : vector<16x384xf32> to vector<16x128xf32>
    %36 = arith.addf %35, %13 : vector<16x128xf32>
    %37 = arith.mulf %25, %36 : vector<16x128xf32>
    %38 = arith.addf %34, %37 : vector<16x128xf32>
    %39 = math.tanh %38 : vector<16x128xf32>
    %cst_16 = arith.constant 1.000000e+00 : f32
    %40 = vector.broadcast %cst_16 : f32 to vector<16x128xf32>
    %41 = arith.subf %40, %33 : vector<16x128xf32>
    %42 = arith.mulf %41, %39 : vector<16x128xf32>
    %43 = arith.mulf %33, %14 : vector<16x128xf32>
    %44 = arith.addf %42, %43 : vector<16x128xf32>
    %45 = vector.extract_strided_slice %9 {offsets = [16, 0], sizes = [16, 384], strides = [1, 1]} : vector<128x384xf32> to vector<16x384xf32>
    %46 = arith.truncf %44 : vector<16x128xf32> to vector<16x128xbf16>
    %cst_17 = arith.constant dense<0.000000e+00> : vector<16x384xf32>
    %47 = tpu.matmul %46, %10, %cst_17 {dimension_numbers = #tpu.dot_dimension_numbers<[1], [0], [0], [1], [0, 0, 1, 1], [], []>} : vector<16x128xbf16>, vector<128x384xbf16>, vector<16x384xf32> -> vector<16x384xf32>
    %48 = vector.extract_strided_slice %45 {offsets = [0, 0], sizes = [16, 128], strides = [1, 1]} : vector<16x384xf32> to vector<16x128xf32>
    %49 = vector.extract_strided_slice %47 {offsets = [0, 0], sizes = [16, 128], strides = [1, 1]} : vector<16x384xf32> to vector<16x128xf32>
    %50 = arith.addf %48, %49 : vector<16x128xf32>
    %51 = arith.negf %50 : vector<16x128xf32>
    %52 = math.exp %51 : vector<16x128xf32>
    %cst_18 = arith.constant 1.000000e+00 : f32
    %53 = vector.broadcast %cst_18 : f32 to vector<16x128xf32>
    %54 = arith.addf %53, %52 : vector<16x128xf32>
    %55 = arith.divf %53, %54 : vector<16x128xf32>
    %56 = vector.extract_strided_slice %45 {offsets = [0, 128], sizes = [16, 128], strides = [1, 1]} : vector<16x384xf32> to vector<16x128xf32>
    %57 = vector.extract_strided_slice %47 {offsets = [0, 128], sizes = [16, 128], strides = [1, 1]} : vector<16x384xf32> to vector<16x128xf32>
    %58 = arith.addf %56, %57 : vector<16x128xf32>
    %59 = arith.negf %58 : vector<16x128xf32>
    %60 = math.exp %59 : vector<16x128xf32>
    %cst_19 = arith.constant 1.000000e+00 : f32
    %61 = vector.broadcast %cst_19 : f32 to vector<16x128xf32>
    %62 = arith.addf %61, %60 : vector<16x128xf32>
    %63 = arith.divf %61, %62 : vector<16x128xf32>
    %64 = vector.extract_strided_slice %45 {offsets = [0, 256], sizes = [16, 128], strides = [1, 1]} : vector<16x384xf32> to vector<16x128xf32>
    %65 = vector.extract_strided_slice %47 {offsets = [0, 256], sizes = [16, 128], strides = [1, 1]} : vector<16x384xf32> to vector<16x128xf32>
    %66 = arith.addf %65, %13 : vector<16x128xf32>
    %67 = arith.mulf %55, %66 : vector<16x128xf32>
    %68 = arith.addf %64, %67 : vector<16x128xf32>
    %69 = math.tanh %68 : vector<16x128xf32>
    %cst_20 = arith.constant 1.000000e+00 : f32
    %70 = vector.broadcast %cst_20 : f32 to vector<16x128xf32>
    %71 = arith.subf %70, %63 : vector<16x128xf32>
    %72 = arith.mulf %71, %69 : vector<16x128xf32>
    %73 = arith.mulf %63, %44 : vector<16x128xf32>
    %74 = arith.addf %72, %73 : vector<16x128xf32>
    %75 = vector.extract_strided_slice %9 {offsets = [32, 0], sizes = [16, 384], strides = [1, 1]} : vector<128x384xf32> to vector<16x384xf32>
    %76 = arith.truncf %74 : vector<16x128xf32> to vector<16x128xbf16>
    %cst_21 = arith.constant dense<0.000000e+00> : vector<16x384xf32>
    %77 = tpu.matmul %76, %10, %cst_21 {dimension_numbers = #tpu.dot_dimension_numbers<[1], [0], [0], [1], [0, 0, 1, 1], [], []>} : vector<16x128xbf16>, vector<128x384xbf16>, vector<16x384xf32> -> vector<16x384xf32>
    %78 = vector.extract_strided_slice %75 {offsets = [0, 0], sizes = [16, 128], strides = [1, 1]} : vector<16x384xf32> to vector<16x128xf32>
    %79 = vector.extract_strided_slice %77 {offsets = [0, 0], sizes = [16, 128], strides = [1, 1]} : vector<16x384xf32> to vector<16x128xf32>
    %80 = arith.addf %78, %79 : vector<16x128xf32>
    %81 = arith.negf %80 : vector<16x128xf32>
    %82 = math.exp %81 : vector<16x128xf32>
    %cst_22 = arith.constant 1.000000e+00 : f32
    %83 = vector.broadcast %cst_22 : f32 to vector<16x128xf32>
    %84 = arith.addf %83, %82 : vector<16x128xf32>
    %85 = arith.divf %83, %84 : vector<16x128xf32>
    %86 = vector.extract_strided_slice %75 {offsets = [0, 128], sizes = [16, 128], strides = [1, 1]} : vector<16x384xf32> to vector<16x128xf32>
    %87 = vector.extract_strided_slice %77 {offsets = [0, 128], sizes = [16, 128], strides = [1, 1]} : vector<16x384xf32> to vector<16x128xf32>
    %88 = arith.addf %86, %87 : vector<16x128xf32>
    %89 = arith.negf %88 : vector<16x128xf32>
    %90 = math.exp %89 : vector<16x128xf32>
    %cst_23 = arith.constant 1.000000e+00 : f32
    %91 = vector.broadcast %cst_23 : f32 to vector<16x128xf32>
    %92 = arith.addf %91, %90 : vector<16x128xf32>
    %93 = arith.divf %91, %92 : vector<16x128xf32>
    %94 = vector.extract_strided_slice %75 {offsets = [0, 256], sizes = [16, 128], strides = [1, 1]} : vector<16x384xf32> to vector<16x128xf32>
    %95 = vector.extract_strided_slice %77 {offsets = [0, 256], sizes = [16, 128], strides = [1, 1]} : vector<16x384xf32> to vector<16x128xf32>
    %96 = arith.addf %95, %13 : vector<16x128xf32>
    %97 = arith.mulf %85, %96 : vector<16x128xf32>
    %98 = arith.addf %94, %97 : vector<16x128xf32>
    %99 = math.tanh %98 : vector<16x128xf32>
    %cst_24 = arith.constant 1.000000e+00 : f32
    %100 = vector.broadcast %cst_24 : f32 to vector<16x128xf32>
    %101 = arith.subf %100, %93 : vector<16x128xf32>
    %102 = arith.mulf %101, %99 : vector<16x128xf32>
    %103 = arith.mulf %93, %74 : vector<16x128xf32>
    %104 = arith.addf %102, %103 : vector<16x128xf32>
    %105 = vector.extract_strided_slice %9 {offsets = [48, 0], sizes = [16, 384], strides = [1, 1]} : vector<128x384xf32> to vector<16x384xf32>
    %106 = arith.truncf %104 : vector<16x128xf32> to vector<16x128xbf16>
    %cst_25 = arith.constant dense<0.000000e+00> : vector<16x384xf32>
    %107 = tpu.matmul %106, %10, %cst_25 {dimension_numbers = #tpu.dot_dimension_numbers<[1], [0], [0], [1], [0, 0, 1, 1], [], []>} : vector<16x128xbf16>, vector<128x384xbf16>, vector<16x384xf32> -> vector<16x384xf32>
    %108 = vector.extract_strided_slice %105 {offsets = [0, 0], sizes = [16, 128], strides = [1, 1]} : vector<16x384xf32> to vector<16x128xf32>
    %109 = vector.extract_strided_slice %107 {offsets = [0, 0], sizes = [16, 128], strides = [1, 1]} : vector<16x384xf32> to vector<16x128xf32>
    %110 = arith.addf %108, %109 : vector<16x128xf32>
    %111 = arith.negf %110 : vector<16x128xf32>
    %112 = math.exp %111 : vector<16x128xf32>
    %cst_26 = arith.constant 1.000000e+00 : f32
    %113 = vector.broadcast %cst_26 : f32 to vector<16x128xf32>
    %114 = arith.addf %113, %112 : vector<16x128xf32>
    %115 = arith.divf %113, %114 : vector<16x128xf32>
    %116 = vector.extract_strided_slice %105 {offsets = [0, 128], sizes = [16, 128], strides = [1, 1]} : vector<16x384xf32> to vector<16x128xf32>
    %117 = vector.extract_strided_slice %107 {offsets = [0, 128], sizes = [16, 128], strides = [1, 1]} : vector<16x384xf32> to vector<16x128xf32>
    %118 = arith.addf %116, %117 : vector<16x128xf32>
    %119 = arith.negf %118 : vector<16x128xf32>
    %120 = math.exp %119 : vector<16x128xf32>
    %cst_27 = arith.constant 1.000000e+00 : f32
    %121 = vector.broadcast %cst_27 : f32 to vector<16x128xf32>
    %122 = arith.addf %121, %120 : vector<16x128xf32>
    %123 = arith.divf %121, %122 : vector<16x128xf32>
    %124 = vector.extract_strided_slice %105 {offsets = [0, 256], sizes = [16, 128], strides = [1, 1]} : vector<16x384xf32> to vector<16x128xf32>
    %125 = vector.extract_strided_slice %107 {offsets = [0, 256], sizes = [16, 128], strides = [1, 1]} : vector<16x384xf32> to vector<16x128xf32>
    %126 = arith.addf %125, %13 : vector<16x128xf32>
    %127 = arith.mulf %115, %126 : vector<16x128xf32>
    %128 = arith.addf %124, %127 : vector<16x128xf32>
    %129 = math.tanh %128 : vector<16x128xf32>
    %cst_28 = arith.constant 1.000000e+00 : f32
    %130 = vector.broadcast %cst_28 : f32 to vector<16x128xf32>
    %131 = arith.subf %130, %123 : vector<16x128xf32>
    %132 = arith.mulf %131, %129 : vector<16x128xf32>
    %133 = arith.mulf %123, %104 : vector<16x128xf32>
    %134 = arith.addf %132, %133 : vector<16x128xf32>
    %135 = vector.extract_strided_slice %9 {offsets = [64, 0], sizes = [16, 384], strides = [1, 1]} : vector<128x384xf32> to vector<16x384xf32>
    %136 = arith.truncf %134 : vector<16x128xf32> to vector<16x128xbf16>
    %cst_29 = arith.constant dense<0.000000e+00> : vector<16x384xf32>
    %137 = tpu.matmul %136, %10, %cst_29 {dimension_numbers = #tpu.dot_dimension_numbers<[1], [0], [0], [1], [0, 0, 1, 1], [], []>} : vector<16x128xbf16>, vector<128x384xbf16>, vector<16x384xf32> -> vector<16x384xf32>
    %138 = vector.extract_strided_slice %135 {offsets = [0, 0], sizes = [16, 128], strides = [1, 1]} : vector<16x384xf32> to vector<16x128xf32>
    %139 = vector.extract_strided_slice %137 {offsets = [0, 0], sizes = [16, 128], strides = [1, 1]} : vector<16x384xf32> to vector<16x128xf32>
    %140 = arith.addf %138, %139 : vector<16x128xf32>
    %141 = arith.negf %140 : vector<16x128xf32>
    %142 = math.exp %141 : vector<16x128xf32>
    %cst_30 = arith.constant 1.000000e+00 : f32
    %143 = vector.broadcast %cst_30 : f32 to vector<16x128xf32>
    %144 = arith.addf %143, %142 : vector<16x128xf32>
    %145 = arith.divf %143, %144 : vector<16x128xf32>
    %146 = vector.extract_strided_slice %135 {offsets = [0, 128], sizes = [16, 128], strides = [1, 1]} : vector<16x384xf32> to vector<16x128xf32>
    %147 = vector.extract_strided_slice %137 {offsets = [0, 128], sizes = [16, 128], strides = [1, 1]} : vector<16x384xf32> to vector<16x128xf32>
    %148 = arith.addf %146, %147 : vector<16x128xf32>
    %149 = arith.negf %148 : vector<16x128xf32>
    %150 = math.exp %149 : vector<16x128xf32>
    %cst_31 = arith.constant 1.000000e+00 : f32
    %151 = vector.broadcast %cst_31 : f32 to vector<16x128xf32>
    %152 = arith.addf %151, %150 : vector<16x128xf32>
    %153 = arith.divf %151, %152 : vector<16x128xf32>
    %154 = vector.extract_strided_slice %135 {offsets = [0, 256], sizes = [16, 128], strides = [1, 1]} : vector<16x384xf32> to vector<16x128xf32>
    %155 = vector.extract_strided_slice %137 {offsets = [0, 256], sizes = [16, 128], strides = [1, 1]} : vector<16x384xf32> to vector<16x128xf32>
    %156 = arith.addf %155, %13 : vector<16x128xf32>
    %157 = arith.mulf %145, %156 : vector<16x128xf32>
    %158 = arith.addf %154, %157 : vector<16x128xf32>
    %159 = math.tanh %158 : vector<16x128xf32>
    %cst_32 = arith.constant 1.000000e+00 : f32
    %160 = vector.broadcast %cst_32 : f32 to vector<16x128xf32>
    %161 = arith.subf %160, %153 : vector<16x128xf32>
    %162 = arith.mulf %161, %159 : vector<16x128xf32>
    %163 = arith.mulf %153, %134 : vector<16x128xf32>
    %164 = arith.addf %162, %163 : vector<16x128xf32>
    %165 = vector.extract_strided_slice %9 {offsets = [80, 0], sizes = [16, 384], strides = [1, 1]} : vector<128x384xf32> to vector<16x384xf32>
    %166 = arith.truncf %164 : vector<16x128xf32> to vector<16x128xbf16>
    %cst_33 = arith.constant dense<0.000000e+00> : vector<16x384xf32>
    %167 = tpu.matmul %166, %10, %cst_33 {dimension_numbers = #tpu.dot_dimension_numbers<[1], [0], [0], [1], [0, 0, 1, 1], [], []>} : vector<16x128xbf16>, vector<128x384xbf16>, vector<16x384xf32> -> vector<16x384xf32>
    %168 = vector.extract_strided_slice %165 {offsets = [0, 0], sizes = [16, 128], strides = [1, 1]} : vector<16x384xf32> to vector<16x128xf32>
    %169 = vector.extract_strided_slice %167 {offsets = [0, 0], sizes = [16, 128], strides = [1, 1]} : vector<16x384xf32> to vector<16x128xf32>
    %170 = arith.addf %168, %169 : vector<16x128xf32>
    %171 = arith.negf %170 : vector<16x128xf32>
    %172 = math.exp %171 : vector<16x128xf32>
    %cst_34 = arith.constant 1.000000e+00 : f32
    %173 = vector.broadcast %cst_34 : f32 to vector<16x128xf32>
    %174 = arith.addf %173, %172 : vector<16x128xf32>
    %175 = arith.divf %173, %174 : vector<16x128xf32>
    %176 = vector.extract_strided_slice %165 {offsets = [0, 128], sizes = [16, 128], strides = [1, 1]} : vector<16x384xf32> to vector<16x128xf32>
    %177 = vector.extract_strided_slice %167 {offsets = [0, 128], sizes = [16, 128], strides = [1, 1]} : vector<16x384xf32> to vector<16x128xf32>
    %178 = arith.addf %176, %177 : vector<16x128xf32>
    %179 = arith.negf %178 : vector<16x128xf32>
    %180 = math.exp %179 : vector<16x128xf32>
    %cst_35 = arith.constant 1.000000e+00 : f32
    %181 = vector.broadcast %cst_35 : f32 to vector<16x128xf32>
    %182 = arith.addf %181, %180 : vector<16x128xf32>
    %183 = arith.divf %181, %182 : vector<16x128xf32>
    %184 = vector.extract_strided_slice %165 {offsets = [0, 256], sizes = [16, 128], strides = [1, 1]} : vector<16x384xf32> to vector<16x128xf32>
    %185 = vector.extract_strided_slice %167 {offsets = [0, 256], sizes = [16, 128], strides = [1, 1]} : vector<16x384xf32> to vector<16x128xf32>
    %186 = arith.addf %185, %13 : vector<16x128xf32>
    %187 = arith.mulf %175, %186 : vector<16x128xf32>
    %188 = arith.addf %184, %187 : vector<16x128xf32>
    %189 = math.tanh %188 : vector<16x128xf32>
    %cst_36 = arith.constant 1.000000e+00 : f32
    %190 = vector.broadcast %cst_36 : f32 to vector<16x128xf32>
    %191 = arith.subf %190, %183 : vector<16x128xf32>
    %192 = arith.mulf %191, %189 : vector<16x128xf32>
    %193 = arith.mulf %183, %164 : vector<16x128xf32>
    %194 = arith.addf %192, %193 : vector<16x128xf32>
    %195 = vector.extract_strided_slice %9 {offsets = [96, 0], sizes = [16, 384], strides = [1, 1]} : vector<128x384xf32> to vector<16x384xf32>
    %196 = arith.truncf %194 : vector<16x128xf32> to vector<16x128xbf16>
    %cst_37 = arith.constant dense<0.000000e+00> : vector<16x384xf32>
    %197 = tpu.matmul %196, %10, %cst_37 {dimension_numbers = #tpu.dot_dimension_numbers<[1], [0], [0], [1], [0, 0, 1, 1], [], []>} : vector<16x128xbf16>, vector<128x384xbf16>, vector<16x384xf32> -> vector<16x384xf32>
    %198 = vector.extract_strided_slice %195 {offsets = [0, 0], sizes = [16, 128], strides = [1, 1]} : vector<16x384xf32> to vector<16x128xf32>
    %199 = vector.extract_strided_slice %197 {offsets = [0, 0], sizes = [16, 128], strides = [1, 1]} : vector<16x384xf32> to vector<16x128xf32>
    %200 = arith.addf %198, %199 : vector<16x128xf32>
    %201 = arith.negf %200 : vector<16x128xf32>
    %202 = math.exp %201 : vector<16x128xf32>
    %cst_38 = arith.constant 1.000000e+00 : f32
    %203 = vector.broadcast %cst_38 : f32 to vector<16x128xf32>
    %204 = arith.addf %203, %202 : vector<16x128xf32>
    %205 = arith.divf %203, %204 : vector<16x128xf32>
    %206 = vector.extract_strided_slice %195 {offsets = [0, 128], sizes = [16, 128], strides = [1, 1]} : vector<16x384xf32> to vector<16x128xf32>
    %207 = vector.extract_strided_slice %197 {offsets = [0, 128], sizes = [16, 128], strides = [1, 1]} : vector<16x384xf32> to vector<16x128xf32>
    %208 = arith.addf %206, %207 : vector<16x128xf32>
    %209 = arith.negf %208 : vector<16x128xf32>
    %210 = math.exp %209 : vector<16x128xf32>
    %cst_39 = arith.constant 1.000000e+00 : f32
    %211 = vector.broadcast %cst_39 : f32 to vector<16x128xf32>
    %212 = arith.addf %211, %210 : vector<16x128xf32>
    %213 = arith.divf %211, %212 : vector<16x128xf32>
    %214 = vector.extract_strided_slice %195 {offsets = [0, 256], sizes = [16, 128], strides = [1, 1]} : vector<16x384xf32> to vector<16x128xf32>
    %215 = vector.extract_strided_slice %197 {offsets = [0, 256], sizes = [16, 128], strides = [1, 1]} : vector<16x384xf32> to vector<16x128xf32>
    %216 = arith.addf %215, %13 : vector<16x128xf32>
    %217 = arith.mulf %205, %216 : vector<16x128xf32>
    %218 = arith.addf %214, %217 : vector<16x128xf32>
    %219 = math.tanh %218 : vector<16x128xf32>
    %cst_40 = arith.constant 1.000000e+00 : f32
    %220 = vector.broadcast %cst_40 : f32 to vector<16x128xf32>
    %221 = arith.subf %220, %213 : vector<16x128xf32>
    %222 = arith.mulf %221, %219 : vector<16x128xf32>
    %223 = arith.mulf %213, %194 : vector<16x128xf32>
    %224 = arith.addf %222, %223 : vector<16x128xf32>
    %225 = vector.extract_strided_slice %9 {offsets = [112, 0], sizes = [16, 384], strides = [1, 1]} : vector<128x384xf32> to vector<16x384xf32>
    %226 = arith.truncf %224 : vector<16x128xf32> to vector<16x128xbf16>
    %cst_41 = arith.constant dense<0.000000e+00> : vector<16x384xf32>
    %227 = tpu.matmul %226, %10, %cst_41 {dimension_numbers = #tpu.dot_dimension_numbers<[1], [0], [0], [1], [0, 0, 1, 1], [], []>} : vector<16x128xbf16>, vector<128x384xbf16>, vector<16x384xf32> -> vector<16x384xf32>
    %228 = vector.extract_strided_slice %225 {offsets = [0, 0], sizes = [16, 128], strides = [1, 1]} : vector<16x384xf32> to vector<16x128xf32>
    %229 = vector.extract_strided_slice %227 {offsets = [0, 0], sizes = [16, 128], strides = [1, 1]} : vector<16x384xf32> to vector<16x128xf32>
    %230 = arith.addf %228, %229 : vector<16x128xf32>
    %231 = arith.negf %230 : vector<16x128xf32>
    %232 = math.exp %231 : vector<16x128xf32>
    %cst_42 = arith.constant 1.000000e+00 : f32
    %233 = vector.broadcast %cst_42 : f32 to vector<16x128xf32>
    %234 = arith.addf %233, %232 : vector<16x128xf32>
    %235 = arith.divf %233, %234 : vector<16x128xf32>
    %236 = vector.extract_strided_slice %225 {offsets = [0, 128], sizes = [16, 128], strides = [1, 1]} : vector<16x384xf32> to vector<16x128xf32>
    %237 = vector.extract_strided_slice %227 {offsets = [0, 128], sizes = [16, 128], strides = [1, 1]} : vector<16x384xf32> to vector<16x128xf32>
    %238 = arith.addf %236, %237 : vector<16x128xf32>
    %239 = arith.negf %238 : vector<16x128xf32>
    %240 = math.exp %239 : vector<16x128xf32>
    %cst_43 = arith.constant 1.000000e+00 : f32
    %241 = vector.broadcast %cst_43 : f32 to vector<16x128xf32>
    %242 = arith.addf %241, %240 : vector<16x128xf32>
    %243 = arith.divf %241, %242 : vector<16x128xf32>
    %244 = vector.extract_strided_slice %225 {offsets = [0, 256], sizes = [16, 128], strides = [1, 1]} : vector<16x384xf32> to vector<16x128xf32>
    %245 = vector.extract_strided_slice %227 {offsets = [0, 256], sizes = [16, 128], strides = [1, 1]} : vector<16x384xf32> to vector<16x128xf32>
    %246 = arith.addf %245, %13 : vector<16x128xf32>
    %247 = arith.mulf %235, %246 : vector<16x128xf32>
    %248 = arith.addf %244, %247 : vector<16x128xf32>
    %249 = math.tanh %248 : vector<16x128xf32>
    %cst_44 = arith.constant 1.000000e+00 : f32
    %250 = vector.broadcast %cst_44 : f32 to vector<16x128xf32>
    %251 = arith.subf %250, %243 : vector<16x128xf32>
    %252 = arith.mulf %251, %249 : vector<16x128xf32>
    %253 = arith.mulf %243, %224 : vector<16x128xf32>
    %254 = arith.addf %252, %253 : vector<16x128xf32>
    %c0_45 = arith.constant 0 : index
    %c0_46 = arith.constant 0 : index
    %255 = vector.load %arg12[%c0_45, %c0_46] : memref<16x128xf32, #tpu.memory_space<vmem>>, vector<16x128xf32>
    tpu.vector_store %arg12[%c0_45, %c0_46], %254 {strides = array<i32>} : memref<16x128xf32, #tpu.memory_space<vmem>>, vector<16x128xf32>,
    %c1_i32 = arith.constant 1 : i32
    %256 = arith.cmpi eq, %arg1, %c1_i32 : i32
    %257 = arith.extui %256 : i1 to i32
    %c0_i32_47 = arith.constant 0 : i32
    %258 = arith.cmpi ne, %257, %c0_i32_47 : i32
    scf.if %258 {
      %c0_48 = arith.constant 0 : index
      %c0_49 = arith.constant 0 : index
      %259 = vector.load %arg11[%c0_48, %c0_49] : memref<16x128xf32, #tpu.memory_space<vmem>>, vector<16x128xf32>
      tpu.vector_store %arg11[%c0_48, %c0_49], %254 {strides = array<i32>} : memref<16x128xf32, #tpu.memory_space<vmem>>, vector<16x128xf32>,
      %260 = arith.truncf %254 : vector<16x128xf32> to vector<16x128xbf16>
      %c0_50 = arith.constant 0 : index
      %c0_51 = arith.constant 0 : index
      %261 = vector.load %arg8[%c0_50, %c0_51] : memref<128x128xbf16, #tpu.memory_space<vmem>>, vector<128x128xbf16>
      %cst_52 = arith.constant dense<0.000000e+00> : vector<16x128xf32>
      %262 = tpu.matmul %260, %261, %cst_52 {dimension_numbers = #tpu.dot_dimension_numbers<[1], [0], [0], [1], [0, 0, 1, 1], [], []>} : vector<16x128xbf16>, vector<128x128xbf16>, vector<16x128xf32> -> vector<16x128xf32>
      %c0_53 = arith.constant 0 : index
      %c0_54 = arith.constant 0 : index
      %263 = vector.load %arg9[%c0_53, %c0_54] : memref<1x128xf32, #tpu.memory_space<vmem>>, vector<1x128xf32>
      %264 = vector.broadcast %263 : vector<1x128xf32> to vector<16x128xf32>
      %265 = arith.addf %262, %264 : vector<16x128xf32>
      %266 = arith.negf %265 : vector<16x128xf32>
      %267 = math.exp %266 : vector<16x128xf32>
      %cst_55 = arith.constant 1.000000e+00 : f32
      %268 = vector.broadcast %cst_55 : f32 to vector<16x128xf32>
      %269 = arith.addf %268, %267 : vector<16x128xf32>
      %270 = arith.divf %268, %269 : vector<16x128xf32>
      %c0_56 = arith.constant 0 : index
      %c0_57 = arith.constant 0 : index
      %271 = vector.load %arg10[%c0_56, %c0_57] : memref<16x128xf32, #tpu.memory_space<vmem>>, vector<16x128xf32>
      tpu.vector_store %arg10[%c0_56, %c0_57], %270 {strides = array<i32>} : memref<16x128xf32, #tpu.memory_space<vmem>>, vector<16x128xf32>,
    } else {
    }
    return
  }
  func.func @transform_0(%arg0: i32, %arg1: i32) -> (i32, i32, i32) {
    %c0_i32 = arith.constant 0 : i32
    %c0_i32_0 = arith.constant 0 : i32
    return %arg1, %arg0, %c0_i32 : i32, i32, i32
  }
  func.func @transform_1(%arg0: i32, %arg1: i32) -> (i32, i32) {
    %c0_i32 = arith.constant 0 : i32
    %c0_i32_0 = arith.constant 0 : i32
    return %arg0, %c0_i32 : i32, i32
  }
  func.func @transform_2(%arg0: i32, %arg1: i32) -> (i32, i32) {
    %c0_i32 = arith.constant 0 : i32
    %c0_i32_0 = arith.constant 0 : i32
    %c0_i32_1 = arith.constant 0 : i32
    return %c0_i32, %c0_i32_0 : i32, i32
  }
  func.func @transform_3(%arg0: i32, %arg1: i32) -> (i32, i32) {
    %c0_i32 = arith.constant 0 : i32
    %c0_i32_0 = arith.constant 0 : i32
    %c0_i32_1 = arith.constant 0 : i32
    return %c0_i32, %c0_i32_0 : i32, i32
  }
  func.func @transform_4(%arg0: i32, %arg1: i32) -> (i32, i32) {
    %c0_i32 = arith.constant 0 : i32
    %c0_i32_0 = arith.constant 0 : i32
    %c0_i32_1 = arith.constant 0 : i32
    return %c0_i32, %c0_i32_0 : i32, i32
  }
  func.func @transform_5(%arg0: i32, %arg1: i32) -> (i32, i32) {
    %c0_i32 = arith.constant 0 : i32
    %c0_i32_0 = arith.constant 0 : i32
    %c0_i32_1 = arith.constant 0 : i32
    return %c0_i32, %c0_i32_0 : i32, i32
  }
  func.func @transform_6(%arg0: i32, %arg1: i32) -> (i32, i32) {
    %c0_i32 = arith.constant 0 : i32
    %c0_i32_0 = arith.constant 0 : i32
    %c0_i32_1 = arith.constant 0 : i32
    return %c0_i32, %c0_i32_0 : i32, i32
  }
  func.func @transform_7(%arg0: i32, %arg1: i32) -> (i32, i32) {
    %c0_i32 = arith.constant 0 : i32
    %c0_i32_0 = arith.constant 0 : i32
    %c0_i32_1 = arith.constant 0 : i32
    return %c0_i32, %c0_i32_0 : i32, i32
  }
  func.func @transform_8(%arg0: i32, %arg1: i32) -> (i32, i32) {
    %c0_i32 = arith.constant 0 : i32
    %c0_i32_0 = arith.constant 0 : i32
    return %arg0, %c0_i32 : i32, i32
  }
  func.func @transform_9(%arg0: i32, %arg1: i32) -> (i32, i32) {
    %c0_i32 = arith.constant 0 : i32
    %c0_i32_0 = arith.constant 0 : i32
    return %arg0, %c0_i32 : i32, i32
  }
}

</mosaic_0001>

<llo_original>
// kernel: tpu_custom_call.1
$region0: #{tpu_custom_call.1}
  #allocation0 [shape = 'u32[]', space=smem, size = 0x4, offset = 0x4, fixed_abs, tag = 'smem constant byte address 0x4 - core index']
  #allocation1 [shape = 'u32[72,128]{1,0:T(1,128)}', space=vmem, size = 0x9000, scoped, tag = 'internal scratch']
  #allocation2 [shape = 'f32[16,128]{1,0:T(8,128)}', space=vmem, size = 0x2000, scoped, tag = 'scratch operand']
  %s0 = inlined_call_operand.hbm [shape: bf16[16,16,128], index: 0, kind: input, shape index: {}]
  %s1 = inlined_call_operand.hbm [shape: f32[16,128], index: 1, kind: input, shape index: {}]
  %s2 = inlined_call_operand.hbm [shape: bf16[128,384], index: 2, kind: input, shape index: {}]
  %s3 = inlined_call_operand.hbm [shape: bf16[128,384], index: 3, kind: input, shape index: {}]
  %s4 = inlined_call_operand.vmem [shape: f32[1,384], index: 4, kind: input, shape index: {}]
  %s5 = inlined_call_operand.vmem [shape: f32[1,128], index: 5, kind: input, shape index: {}]
  %s6 = inlined_call_operand.hbm [shape: bf16[128,128], index: 6, kind: input, shape index: {}]
  %s7 = inlined_call_operand.vmem [shape: f32[1,128], index: 7, kind: input, shape index: {}]
  %s8 = inlined_call_operand.hbm [shape: f32[16,128], index: 8, kind: output, shape index: {0}]
  %s9 = inlined_call_operand.hbm [shape: f32[16,128], index: 9, kind: output, shape index: {1}]
  %10 = xla_tuple %s8, %s9
  %s11 = sld [smem:[#allocation0]]
  $region101: #{tpu_custom_call.1} parent=0
    _
  %s13 = ssub.s32 1, %s11
  %s14 = scalar_select 0, %s13, %s11
  $region1: #{tpu_custom_call.1} parent=0
    #allocation3 [shape = 'u8[65536]{0}', space=vmem, size = 0x10000, scoped, tag = 'input window, operand 0']
    #allocation4 [shape = 's32[2]{0}', space=sflag, size = 0x8, scoped, tag = 'scoped memory for tpu_custom_call.1']
    #allocation5 [shape = 's32[2]{0}', space=sflag, size = 0x8, scoped, tag = 'scoped memory for tpu_custom_call.1']
    #allocation6 [shape = 'u8[8192]{0}', space=vmem, size = 0x2000, scoped, tag = 'input window, operand 1, single buffered']
    #allocation7 [shape = 's32[1]{0}', space=sflag, size = 0x4, scoped, tag = 'scoped memory for tpu_custom_call.1']
    #allocation8 [shape = 'u8[98304]{0}', space=vmem, size = 0x18000, scoped, tag = 'input window, operand 2, single buffered']
    #allocation9 [shape = 'u8[98304]{0}', space=vmem, size = 0x18000, scoped, tag = 'input window, operand 3, single buffered']
    #allocation10 [shape = 's32[1]{0}', space=sflag, size = 0x4, scoped, tag = 'scoped memory for tpu_custom_call.1']
    #allocation11 [shape = 'u8[32768]{0}', space=vmem, size = 0x8000, scoped, tag = 'input window, operand 6, single buffered']
    #allocation12 [shape = 'u8[8192]{0}', space=vmem, size = 0x2000, scoped, tag = 'output window, operand 0, single buffered']
    #allocation13 [shape = 'u8[8192]{0}', space=vmem, size = 0x2000, scoped, tag = 'output window, operand 1, single buffered']
    #allocation14 [shape = 's32[1]{0}', space=sflag, size = 0x4, scoped, tag = 'scoped memory for tpu_custom_call.1']
    %15 = vsyncpa [#allocation4], 0
    %s16 = scalar_lea.sflag [#allocation4], 1
    %17 = vsyncpa %s16, 0
    %18 = vsyncpa [#allocation7], 0
    %19 = vsyncpa [#allocation10], 0
    %20 = vsyncpa [#allocation5], 0
    %21 = vsyncpa [#allocation14], 0
    loop: start=0, step=1, limit=4
    $region2: #{tpu_custom_call.1} parent=1 // loop_pre_header
      _
    $region3: #{tpu_custom_call.1} parent=1 // loop_header
      %s23 = sphi 0, %s27
      %p24 = scmp.ge.s32.totalorder %s23, 4
      %s30 = sphi 0, %s42
      %s31 = sphi 0, %s38
      %s32 = sphi 0, %s30
      %s33 = sphi 0, %s31
      %s34 = sphi 0, %s32
      %s35 = sphi 0, %s33
      %s47 = sphi 0, %s49
      %s50 = sphi 0, %s47
      %s51 = sphi 0, %s50
      %s67 = sphi 0, %s51
      %s73 = sphi 0, %s75
      %s76 = sphi 0, %s73
      %s77 = sphi 0, %s76
      %s93 = sphi 0, %s77
      %s97 = sphi 0, %s97
      %s99 = sphi 0, %s97
      %s100 = sphi 0, %s99
      %s114 = sphi 0, %s100
      %s118 = sphi 0, %s118
      %s120 = sphi 0, %s118
      %s121 = sphi 0, %s120
      %s135 = sphi 0, %s121
      %s139 = sphi 0, %s139
      %s141 = sphi 0, %s139
      %s142 = sphi 0, %s141
      %s156 = sphi 0, %s142
      %s160 = sphi 0, %s160
      %s162 = sphi 0, %s160
      %s163 = sphi 0, %s162
      %s177 = sphi 0, %s163
      %s181 = sphi 0, %s181
      %s183 = sphi 0, %s181
      %s184 = sphi 0, %s183
      %s198 = sphi 0, %s184
      %s202 = sphi 0, %s202
      %s204 = sphi 0, %s202
      %s205 = sphi 0, %s204
      %s219 = sphi 0, %s205
      %s225 = sphi 0, %s227
      %s228 = sphi 0, %s225
      %s229 = sphi 0, %s228
      %s245 = sphi 0, %s229
      %s251 = sphi 0, %s253
      %s254 = sphi 0, %s251
      %s255 = sphi 0, %s254
      %s271 = sphi 0, %s255
    $region4: #{tpu_custom_call.1} parent=1 // loop_header_branch
      %26 = sbr.rel (%p24) target = $region8
    $region5: #{tpu_custom_call.1} parent=1 // loop_body
      %s28 = ssub.s32 %s23, 1
      %s29 = ssub.s32 %s23, 2
      %s36 = sadd.s32 1, %s31
      %p37 = scmp.ge.s32.totalorder %s36, 2
      %s38 = scalar_select %p37, 0, %s36
      %s39 = sadd.s32 1, %s30
      %s40 = scalar_select %p37, %s39, %s30
      %p41 = scmp.ge.s32.totalorder %s40, 1
      %s42 = scalar_select %p41, 0, %s40
      %s43 = ssub.s32 %s31, %s38
      %s44 = ssub.s32 %s30, %s42
      %s45 = sor.u32 %s43, %s44
      %p46 = scmp.eq.s32.totalorder %s45, 0
      %s48 = sadd.s32 %s47, 1
      %s49 = scalar_select %p46, %s47, %s48
      %p52 = pneg %p46
      %p53 = scmp.eq.s32.totalorder %s23, 1
      %p54 = por %p52, %p53
      %p55 = scmp.ne.s32.totalorder %s47, %s50
      %p56 = scmp.eq.s32.totalorder %s23, 0
      %p57 = por %p55, %p56
      %p58 = scmp.ne.s32.totalorder %s47, %s50
      %p59 = scmp.eq.s32.totalorder %s28, 1
      %p60 = por %p58, %p59
      %p61 = scmp.ne.s32.totalorder %s50, %s51
      %p62 = scmp.eq.s32.totalorder %s28, 0
      %p63 = por %p61, %p62
      %p64 = scmp.ne.s32.totalorder %s50, %s51
      %p65 = scmp.eq.s32.totalorder %s29, 1
      %p66 = por %p64, %p65
      %p68 = scmp.ne.s32.totalorder %s51, %s67
      %p69 = scmp.eq.s32.totalorder %s29, 0
      %p70 = por %p68, %p69
      %s71 = ssub.s32 %s30, %s42
      %p72 = scmp.eq.s32.totalorder %s71, 0
      %s74 = sadd.s32 %s73, 1
      %s75 = scalar_select %p72, %s73, %s74
      %p78 = pneg %p72
      %p79 = scmp.eq.s32.totalorder %s23, 1
      %p80 = por %p78, %p79
      %p81 = scmp.ne.s32.totalorder %s73, %s76
      %p82 = scmp.eq.s32.totalorder %s23, 0
      %p83 = por %p81, %p82
      %p84 = scmp.ne.s32.totalorder %s73, %s76
      %p85 = scmp.eq.s32.totalorder %s28, 1
      %p86 = por %p84, %p85
      %p87 = scmp.ne.s32.totalorder %s76, %s77
      %p88 = scmp.eq.s32.totalorder %s28, 0
      %p89 = por %p87, %p88
      %p90 = scmp.ne.s32.totalorder %s76, %s77
      %p91 = scmp.eq.s32.totalorder %s29, 1
      %p92 = por %p90, %p91
      %p94 = scmp.ne.s32.totalorder %s77, %s93
      %p95 = scmp.eq.s32.totalorder %s29, 0
      %p96 = por %p94, %p95
      %s98 = sadd.s32 %s97, 1
      %p101 = scmp.eq.s32.totalorder %s23, 1
      %p102 = scmp.ne.s32.totalorder %s97, %s99
      %p103 = scmp.eq.s32.totalorder %s23, 0
      %p104 = por %p102, %p103
      %p105 = scmp.ne.s32.totalorder %s97, %s99
      %p106 = scmp.eq.s32.totalorder %s28, 1
      %p107 = por %p105, %p106
      %p108 = scmp.ne.s32.totalorder %s99, %s100
      %p109 = scmp.eq.s32.totalorder %s28, 0
      %p110 = por %p108, %p109
      %p111 = scmp.ne.s32.totalorder %s99, %s100
      %p112 = scmp.eq.s32.totalorder %s29, 1
      %p113 = por %p111, %p112
      %p115 = scmp.ne.s32.totalorder %s100, %s114
      %p116 = scmp.eq.s32.totalorder %s29, 0
      %p117 = por %p115, %p116
      %s119 = sadd.s32 %s118, 1
      %p122 = scmp.eq.s32.totalorder %s23, 1
      %p123 = scmp.ne.s32.totalorder %s118, %s120
      %p124 = scmp.eq.s32.totalorder %s23, 0
      %p125 = por %p123, %p124
      %p126 = scmp.ne.s32.totalorder %s118, %s120
      %p127 = scmp.eq.s32.totalorder %s28, 1
      %p128 = por %p126, %p127
      %p129 = scmp.ne.s32.totalorder %s120, %s121
      %p130 = scmp.eq.s32.totalorder %s28, 0
      %p131 = por %p129, %p130
      %p132 = scmp.ne.s32.totalorder %s120, %s121
      %p133 = scmp.eq.s32.totalorder %s29, 1
      %p134 = por %p132, %p133
      %p136 = scmp.ne.s32.totalorder %s121, %s135
      %p137 = scmp.eq.s32.totalorder %s29, 0
      %p138 = por %p136, %p137
      %s140 = sadd.s32 %s139, 1
      %p143 = scmp.eq.s32.totalorder %s23, 1
      %p144 = scmp.ne.s32.totalorder %s139, %s141
      %p145 = scmp.eq.s32.totalorder %s23, 0
      %p146 = por %p144, %p145
      %p147 = scmp.ne.s32.totalorder %s139, %s141
      %p148 = scmp.eq.s32.totalorder %s28, 1
      %p149 = por %p147, %p148
      %p150 = scmp.ne.s32.totalorder %s141, %s142
      %p151 = scmp.eq.s32.totalorder %s28, 0
      %p152 = por %p150, %p151
      %p153 = scmp.ne.s32.totalorder %s141, %s142
      %p154 = scmp.eq.s32.totalorder %s29, 1
      %p155 = por %p153, %p154
      %p157 = scmp.ne.s32.totalorder %s142, %s156
      %p158 = scmp.eq.s32.totalorder %s29, 0
      %p159 = por %p157, %p158
      %s161 = sadd.s32 %s160, 1
      %p164 = scmp.eq.s32.totalorder %s23, 1
      %p165 = scmp.ne.s32.totalorder %s160, %s162
      %p166 = scmp.eq.s32.totalorder %s23, 0
      %p167 = por %p165, %p166
      %p168 = scmp.ne.s32.totalorder %s160, %s162
      %p169 = scmp.eq.s32.totalorder %s28, 1
      %p170 = por %p168, %p169
      %p171 = scmp.ne.s32.totalorder %s162, %s163
      %p172 = scmp.eq.s32.totalorder %s28, 0
      %p173 = por %p171, %p172
      %p174 = scmp.ne.s32.totalorder %s162, %s163
      %p175 = scmp.eq.s32.totalorder %s29, 1
      %p176 = por %p174, %p175
      %p178 = scmp.ne.s32.totalorder %s163, %s177
      %p179 = scmp.eq.s32.totalorder %s29, 0
      %p180 = por %p178, %p179
      %s182 = sadd.s32 %s181, 1
      %p185 = scmp.eq.s32.totalorder %s23, 1
      %p186 = scmp.ne.s32.totalorder %s181, %s183
      %p187 = scmp.eq.s32.totalorder %s23, 0
      %p188 = por %p186, %p187
      %p189 = scmp.ne.s32.totalorder %s181, %s183
      %p190 = scmp.eq.s32.totalorder %s28, 1
      %p191 = por %p189, %p190
      %p192 = scmp.ne.s32.totalorder %s183, %s184
      %p193 = scmp.eq.s32.totalorder %s28, 0
      %p194 = por %p192, %p193
      %p195 = scmp.ne.s32.totalorder %s183, %s184
      %p196 = scmp.eq.s32.totalorder %s29, 1
      %p197 = por %p195, %p196
      %p199 = scmp.ne.s32.totalorder %s184, %s198
      %p200 = scmp.eq.s32.totalorder %s29, 0
      %p201 = por %p199, %p200
      %s203 = sadd.s32 %s202, 1
      %p206 = scmp.eq.s32.totalorder %s23, 1
      %p207 = scmp.ne.s32.totalorder %s202, %s204
      %p208 = scmp.eq.s32.totalorder %s23, 0
      %p209 = por %p207, %p208
      %p210 = scmp.ne.s32.totalorder %s202, %s204
      %p211 = scmp.eq.s32.totalorder %s28, 1
      %p212 = por %p210, %p211
      %p213 = scmp.ne.s32.totalorder %s204, %s205
      %p214 = scmp.eq.s32.totalorder %s28, 0
      %p215 = por %p213, %p214
      %p216 = scmp.ne.s32.totalorder %s204, %s205
      %p217 = scmp.eq.s32.totalorder %s29, 1
      %p218 = por %p216, %p217
      %p220 = scmp.ne.s32.totalorder %s205, %s219
      %p221 = scmp.eq.s32.totalorder %s29, 0
      %p222 = por %p220, %p221
      %s223 = ssub.s32 %s30, %s42
      %p224 = scmp.eq.s32.totalorder %s223, 0
      %s226 = sadd.s32 %s225, 1
      %s227 = scalar_select %p224, %s225, %s226
      %p230 = pneg %p224
      %p231 = scmp.eq.s32.totalorder %s23, 1
      %p232 = por %p230, %p231
      %p233 = scmp.ne.s32.totalorder %s225, %s228
      %p234 = scmp.eq.s32.totalorder %s23, 0
      %p235 = por %p233, %p234
      %p236 = scmp.ne.s32.totalorder %s225, %s228
      %p237 = scmp.eq.s32.totalorder %s28, 1
      %p238 = por %p236, %p237
      %p239 = scmp.ne.s32.totalorder %s228, %s229
      %p240 = scmp.eq.s32.totalorder %s28, 0
      %p241 = por %p239, %p240
      %p242 = scmp.ne.s32.totalorder %s228, %s229
      %p243 = scmp.eq.s32.totalorder %s29, 1
      %p244 = por %p242, %p243
      %p246 = scmp.ne.s32.totalorder %s229, %s245
      %p247 = scmp.eq.s32.totalorder %s29, 0
      %p248 = por %p246, %p247
      %s249 = ssub.s32 %s30, %s42
      %p250 = scmp.eq.s32.totalorder %s249, 0
      %s252 = sadd.s32 %s251, 1
      %s253 = scalar_select %p250, %s251, %s252
      %p256 = pneg %p250
      %p257 = scmp.eq.s32.totalorder %s23, 1
      %p258 = por %p256, %p257
      %p259 = scmp.ne.s32.totalorder %s251, %s254
      %p260 = scmp.eq.s32.totalorder %s23, 0
      %p261 = por %p259, %p260
      %p262 = scmp.ne.s32.totalorder %s251, %s254
      %p263 = scmp.eq.s32.totalorder %s28, 1
      %p264 = por %p262, %p263
      %p265 = scmp.ne.s32.totalorder %s254, %s255
      %p266 = scmp.eq.s32.totalorder %s28, 0
      %p267 = por %p265, %p266
      %p268 = scmp.ne.s32.totalorder %s254, %s255
      %p269 = scmp.eq.s32.totalorder %s29, 1
      %p270 = por %p268, %p269
      %p272 = scmp.ne.s32.totalorder %s255, %s271
      %p273 = scmp.eq.s32.totalorder %s29, 0
      %p274 = por %p272, %p273
      %p275 = scmp.le.s32.totalorder 1, %s23
      %p276 = scmp.lt.s32.totalorder %s23, 3
      %p277 = pnand %p275, %p276
      %p278 = pneg %p277
      // Predicated region
      $region9: #{tpu_custom_call.1} parent=5 // pred_check
        _
      $region10: #{tpu_custom_call.1} parent=5 // pred_check_branch
        %280 = sbr.rel (%p277) target = $region12
      $region11: #{tpu_custom_call.1} parent=5 // pred_region
        %s281 = ssub.s32 %s23, 1
        // Predicated region
        $region13: #{tpu_custom_call.1} parent=11 // pred_check
          %p282 = pneg %p89
        $region14: #{tpu_custom_call.1} parent=11 // pred_check_branch
          %284 = sbr.rel (%p282) target = $region16
        $region15: #{tpu_custom_call.1} parent=11 // pred_region
          %s285 = smul.u32 2, %s32
          %287 = vsyncadd [#allocation7], 0
          %s288 = smul.addr %s285, 8
          %s289 = scalar_lea.hbm %s1, %s288
          %s290 = sshll.u32 %s289, 4
          %s291 = int_to_ptr.hbm [resolvable:$true] %s290
          %s292 = sshll.u32 [#allocation6], 4
          %s293 = int_to_ptr.vmem [resolvable:$true] %s292
          %298 = dma.hbm_to_vmem [thread:$0]  %s291, 256, %s293, [#allocation7], 128, 128, 8
        $region16: #{tpu_custom_call.1} parent=11 // pred_fallthru
          _
        // Predicated region
        $region17: #{tpu_custom_call.1} parent=11 // pred_check
          %p299 = pneg %p110
        $region18: #{tpu_custom_call.1} parent=11 // pred_check_branch
          %301 = sbr.rel (%p299) target = $region20
        $region19: #{tpu_custom_call.1} parent=11 // pred_region
          %303 = vsyncadd [#allocation7], 0
          %s304 = sshll.u32 %s2, 4
          %s305 = int_to_ptr.hbm [resolvable:$true] %s304
          %s306 = sshll.u32 [#allocation8], 4
          %s307 = int_to_ptr.vmem [resolvable:$true] %s306
          %312 = dma.hbm_to_vmem [thread:$0]  %s305, 3072, %s307, [#allocation7], 192, 192, 12
        $region20: #{tpu_custom_call.1} parent=11 // pred_fallthru
          _
        // Predicated region
        $region21: #{tpu_custom_call.1} parent=11 // pred_check
          %p313 = pneg %p131
        $region22: #{tpu_custom_call.1} parent=11 // pred_check_branch
          %315 = sbr.rel (%p313) target = $region24
        $region23: #{tpu_custom_call.1} parent=11 // pred_region
          %317 = vsyncadd [#allocation10], 0
          %s318 = sshll.u32 %s3, 4
          %s319 = int_to_ptr.hbm [resolvable:$true] %s318
          %s320 = sshll.u32 [#allocation9], 4
          %s321 = int_to_ptr.vmem [resolvable:$true] %s320
          %326 = dma.hbm_to_vmem [thread:$0]  %s319, 3072, %s321, [#allocation10], 192, 192, 12
        $region24: #{tpu_custom_call.1} parent=11 // pred_fallthru
          _
        // Predicated region
        $region25: #{tpu_custom_call.1} parent=11 // pred_check
          %p327 = pneg %p152
        $region26: #{tpu_custom_call.1} parent=11 // pred_check_branch
          %329 = sbr.rel (%p327) target = $region28
        $region27: #{tpu_custom_call.1} parent=11 // pred_region
          _
        $region28: #{tpu_custom_call.1} parent=11 // pred_fallthru
          _
        // Predicated region
        $region29: #{tpu_custom_call.1} parent=11 // pred_check
          %p330 = pneg %p173
        $region30: #{tpu_custom_call.1} parent=11 // pred_check_branch
          %332 = sbr.rel (%p330) target = $region32
        $region31: #{tpu_custom_call.1} parent=11 // pred_region
          _
        $region32: #{tpu_custom_call.1} parent=11 // pred_fallthru
          _
        // Predicated region
        $region33: #{tpu_custom_call.1} parent=11 // pred_check
          %p333 = pneg %p194
        $region34: #{tpu_custom_call.1} parent=11 // pred_check_branch
          %335 = sbr.rel (%p333) target = $region36
        $region35: #{tpu_custom_call.1} parent=11 // pred_region
          %337 = vsyncadd [#allocation10], 0
          %s338 = sshll.u32 %s6, 4
          %s339 = int_to_ptr.hbm [resolvable:$true] %s338
          %s340 = sshll.u32 [#allocation11], 4
          %s341 = int_to_ptr.vmem [resolvable:$true] %s340
          %346 = dma.hbm_to_vmem [thread:$0]  %s339, 1024, %s341, [#allocation10], 64, 64, 4
        $region36: #{tpu_custom_call.1} parent=11 // pred_fallthru
          _
        // Predicated region
        $region37: #{tpu_custom_call.1} parent=11 // pred_check
          %p347 = pneg %p215
        $region38: #{tpu_custom_call.1} parent=11 // pred_check_branch
          %349 = sbr.rel (%p347) target = $region40
        $region39: #{tpu_custom_call.1} parent=11 // pred_region
          _
        $region40: #{tpu_custom_call.1} parent=11 // pred_fallthru
          _
      $region12: #{tpu_custom_call.1} parent=5 // pred_fallthru
        _
      %p350 = scmp.lt.s32.totalorder %s23, 2
      // Predicated region
      $region41: #{tpu_custom_call.1} parent=5 // pred_check
        %p351 = pneg %p350
      $region42: #{tpu_custom_call.1} parent=5 // pred_check_branch
        %353 = sbr.rel (%p351) target = $region44
      $region43: #{tpu_custom_call.1} parent=5 // pred_region
        // Predicated region
        $region45: #{tpu_custom_call.1} parent=43 // pred_check
          %p354 = pneg %p57
        $region46: #{tpu_custom_call.1} parent=43 // pred_check_branch
          %356 = sbr.rel (%p354) target = $region48
        $region47: #{tpu_custom_call.1} parent=43 // pred_region
          %s357 = sand.u32 %s47, 1
          %s358 = scalar_lea.sflag [#allocation4], %s357
          %s359 = sand.u32 %s47, 1
          %s360 = smul.addr %s359, 64
          %s361 = scalar_lea.vmem [#allocation3], %s360
          %s362 = smul.u32 8, %s31
          %s363 = smul.u32 2, %s30
          %365 = vsyncadd %s358, 0
          %s366 = smul.addr %s362, 2
          %s367 = sadd.s32 %s363, %s366
          %s368 = smul.addr %s367, 4
          %s369 = scalar_lea.hbm %s0, %s368
          %s370 = sshll.u32 %s369, 4
          %s371 = int_to_ptr.hbm [resolvable:$true] %s370
          %s372 = sshll.u32 %s361, 4
          %s373 = int_to_ptr.vmem [resolvable:$true] %s372
          %378 = dma.hbm_to_vmem [thread:$0]  %s371, 1024, %s373, %s358, 64, 64, 4
        $region48: #{tpu_custom_call.1} parent=43 // pred_fallthru
          _
      $region44: #{tpu_custom_call.1} parent=5 // pred_fallthru
        _
      %p379 = scmp.le.s32.totalorder 1, %s23
      %p380 = scmp.lt.s32.totalorder %s23, 3
      %p381 = pnand %p379, %p380
      %p382 = pneg %p381
      // Predicated region
      $region49: #{tpu_custom_call.1} parent=5 // pred_check
        _
      $region50: #{tpu_custom_call.1} parent=5 // pred_check_branch
        %384 = sbr.rel (%p381) target = $region52
      $region51: #{tpu_custom_call.1} parent=5 // pred_region
        %s385 = ssub.s32 %s23, 1
        %s386 = sand.u32 %s50, 1
        %s387 = scalar_lea.sflag [#allocation4], %s386
        %s388 = sand.u32 %s50, 1
        %s389 = smul.addr %s388, 64
        %s390 = scalar_lea.vmem [#allocation3], %s389
        // Predicated region
        $region53: #{tpu_custom_call.1} parent=51 // pred_check
          %p391 = pneg %p63
        $region54: #{tpu_custom_call.1} parent=51 // pred_check_branch
          %393 = sbr.rel (%p391) target = $region56
        $region55: #{tpu_custom_call.1} parent=51 // pred_region
          %395 = dma.done %s387, 1024
        $region56: #{tpu_custom_call.1} parent=51 // pred_fallthru
          _
        // Predicated region
        $region57: #{tpu_custom_call.1} parent=51 // pred_check
          %p396 = pneg %p89
        $region58: #{tpu_custom_call.1} parent=51 // pred_check_branch
          %398 = sbr.rel (%p396) target = $region60
        $region59: #{tpu_custom_call.1} parent=51 // pred_region
          %400 = dma.done [#allocation7], 256
        $region60: #{tpu_custom_call.1} parent=51 // pred_fallthru
          _
        // Predicated region
        $region61: #{tpu_custom_call.1} parent=51 // pred_check
          %p401 = pneg %p110
        $region62: #{tpu_custom_call.1} parent=51 // pred_check_branch
          %403 = sbr.rel (%p401) target = $region64
        $region63: #{tpu_custom_call.1} parent=51 // pred_region
          %405 = dma.done [#allocation7], 3072
        $region64: #{tpu_custom_call.1} parent=51 // pred_fallthru
          _
        // Predicated region
        $region65: #{tpu_custom_call.1} parent=51 // pred_check
          %p406 = pneg %p131
        $region66: #{tpu_custom_call.1} parent=51 // pred_check_branch
          %408 = sbr.rel (%p406) target = $region68
        $region67: #{tpu_custom_call.1} parent=51 // pred_region
          %410 = dma.done [#allocation10], 3072
        $region68: #{tpu_custom_call.1} parent=51 // pred_fallthru
          _
        // Predicated region
        $region69: #{tpu_custom_call.1} parent=51 // pred_check
          %p411 = pneg %p194
        $region70: #{tpu_custom_call.1} parent=51 // pred_check_branch
          %413 = sbr.rel (%p411) target = $region72
        $region71: #{tpu_custom_call.1} parent=51 // pred_region
          %415 = dma.done [#allocation10], 1024
        $region72: #{tpu_custom_call.1} parent=51 // pred_fallthru
          _
        %s416 = sand.u32 %s50, 1
        %s417 = scalar_lea.sflag [#allocation4], %s416
        %s418 = sand.u32 %s50, 1
        %s419 = smul.addr %s418, 64
        %s420 = scalar_lea.vmem [#allocation3], %s419
        %p421 = pneg %p63
        %p422 = pneg %p60
        %p423 = pneg %p89
        %p424 = pneg %p86
        %p425 = pneg %p110
        %p426 = pneg %p107
        %p427 = pneg %p131
        %p428 = pneg %p128
        %p429 = pneg %p152
        %p430 = pneg %p149
        %p431 = pneg %p173
        %p432 = pneg %p170
        %p433 = pneg %p194
        %p434 = pneg %p191
        %p435 = pneg %p215
        %p436 = pneg %p212
        %p437 = pneg %p241
        %p438 = pneg %p238
        %p439 = pneg %p267
        %p440 = pneg %p264
        %s441 = smul.u32 8, %s33
        %s442 = smul.u32 2, %s32
        %s443 = smul.u32 2, %s32
        %s444 = smul.u32 2, %s32
        %s445 = smul.u32 2, %s32
        %p446 = scmp.eq.s32.totalorder %s33, 0
        // Predicated region
        $region73: #{tpu_custom_call.1} parent=51 // pred_check
          %p447 = pneg %p446
        $region74: #{tpu_custom_call.1} parent=51 // pred_check_branch
          %449 = sbr.rel (%p447) target = $region76
        $region75: #{tpu_custom_call.1} parent=51 // pred_region
          %v450 = vld [vmem:[#allocation6] sm:$0xff]
          %v451 = vld [vmem:[#allocation6 + $0x8] sm:$0xff]
          %452 = vst [vmem:[#allocation2] sm:$0xff] %v450
          %453 = vst [vmem:[#allocation2 + $0x8] sm:$0xff] %v451
        $region76: #{tpu_custom_call.1} parent=51 // pred_fallthru
          _
        %v454 = vld [vmem:[%s390] sm:$0xf]
        %v455 = vld [vmem:[%s390 + $0x4] sm:$0xf]
        %v456 = vld [vmem:[%s390 + $0x8] sm:$0xf]
        %v457 = vld [vmem:[%s390 + $0xc] sm:$0xf]
        %v458 = vld [vmem:[%s390 + $0x10] sm:$0xf]
        %v459 = vld [vmem:[%s390 + $0x14] sm:$0xf]
        %v460 = vld [vmem:[%s390 + $0x18] sm:$0xf]
        %v461 = vld [vmem:[%s390 + $0x1c] sm:$0xf]
        %v462 = vld [vmem:[%s390 + $0x20] sm:$0xf]
        %v463 = vld [vmem:[%s390 + $0x24] sm:$0xf]
        %v464 = vld [vmem:[%s390 + $0x28] sm:$0xf]
        %v465 = vld [vmem:[%s390 + $0x2c] sm:$0xf]
        %v466 = vld [vmem:[%s390 + $0x30] sm:$0xf]
        %v467 = vld [vmem:[%s390 + $0x34] sm:$0xf]
        %v468 = vld [vmem:[%s390 + $0x38] sm:$0xf]
        %v469 = vld [vmem:[%s390 + $0x3c] sm:$0xf]
        %v470 = vld [vmem:[#allocation8] sm:$0xff]
        %v471 = vld [vmem:[#allocation8 + $0x8] sm:$0xf]
        %v472 = vld [vmem:[#allocation8 + $0xc] sm:$0xff]
        %v473 = vld [vmem:[#allocation8 + $0x14] sm:$0xf]
        %v474 = vld [vmem:[#allocation8 + $0x18] sm:$0xff]
        %v475 = vld [vmem:[#allocation8 + $0x20] sm:$0xf]
        %v476 = vld [vmem:[#allocation8 + $0x24] sm:$0xff]
        %v477 = vld [vmem:[#allocation8 + $0x2c] sm:$0xf]
        %v478 = vld [vmem:[#allocation8 + $0x30] sm:$0xff]
        %v479 = vld [vmem:[#allocation8 + $0x38] sm:$0xf]
        %v480 = vld [vmem:[#allocation8 + $0x3c] sm:$0xff]
        %v481 = vld [vmem:[#allocation8 + $0x44] sm:$0xf]
        %v482 = vld [vmem:[#allocation8 + $0x48] sm:$0xff]
        %v483 = vld [vmem:[#allocation8 + $0x50] sm:$0xf]
        %v484 = vld [vmem:[#allocation8 + $0x54] sm:$0xff]
        %v485 = vld [vmem:[#allocation8 + $0x5c] sm:$0xf]
        %v486 = vld [vmem:[#allocation8 + $0x60] sm:$0xff]
        %v487 = vld [vmem:[#allocation8 + $0x68] sm:$0xf]
        %v488 = vld [vmem:[#allocation8 + $0x6c] sm:$0xff]
        %v489 = vld [vmem:[#allocation8 + $0x74] sm:$0xf]
        %v490 = vld [vmem:[#allocation8 + $0x78] sm:$0xff]
        %v491 = vld [vmem:[#allocation8 + $0x80] sm:$0xf]
        %v492 = vld [vmem:[#allocation8 + $0x84] sm:$0xff]
        %v493 = vld [vmem:[#allocation8 + $0x8c] sm:$0xf]
        %v494 = vld [vmem:[#allocation8 + $0x90] sm:$0xff]
        %v495 = vld [vmem:[#allocation8 + $0x98] sm:$0xf]
        %v496 = vld [vmem:[#allocation8 + $0x9c] sm:$0xff]
        %v497 = vld [vmem:[#allocation8 + $0xa4] sm:$0xf]
        %v498 = vld [vmem:[#allocation8 + $0xa8] sm:$0xff]
        %v499 = vld [vmem:[#allocation8 + $0xb0] sm:$0xf]
        %v500 = vld [vmem:[#allocation8 + $0xb4] sm:$0xff]
        %v501 = vld [vmem:[#allocation8 + $0xbc] sm:$0xf]
        %v502 = vld [vmem:[%s4] sm:$0x7]
        %v504 = vperm.slane %v502, 0
        %v505 = vperm.slane %v502, 1
        %v506 = vperm.slane %v502, 2
        %v526 = vunpack.c.l.b16 %v454
        %v527 = vunpack.c.l.b16 %v455
        %v528 = vunpack.c.l.b16 %v456
        %v529 = vunpack.c.l.b16 %v457
        %v530 = vunpack.c.l.b16 %v458
        %v531 = vunpack.c.l.b16 %v459
        %v532 = vunpack.c.l.b16 %v460
        %v533 = vunpack.c.l.b16 %v461
        %v534 = vunpack.c.l.b16 %v462
        %v535 = vunpack.c.l.b16 %v463
        %v536 = vunpack.c.l.b16 %v464
        %v537 = vunpack.c.l.b16 %v465
        %v538 = vunpack.c.l.b16 %v466
        %v539 = vunpack.c.l.b16 %v467
        %v540 = vunpack.c.l.b16 %v468
        %v541 = vunpack.c.l.b16 %v469
        %v542 = vpack.c.b16 %v527, %v526
        %v543 = vpack.c.b16 %v529, %v528
        %v544 = vpack.c.b16 %v531, %v530
        %v545 = vpack.c.b16 %v533, %v532
        %v546 = vpack.c.b16 %v535, %v534
        %v547 = vpack.c.b16 %v537, %v536
        %v548 = vpack.c.b16 %v539, %v538
        %v549 = vpack.c.b16 %v541, %v540
        %v590 = vunpack.c.l.b16 %v470
        %v591 = vunpack.c.h.b16 %v470
        %v592 = vunpack.c.l.b16 %v471
        %v593 = vunpack.c.l.b16 %v472
        %v594 = vunpack.c.h.b16 %v472
        %v595 = vunpack.c.l.b16 %v473
        %v596 = vunpack.c.l.b16 %v474
        %v597 = vunpack.c.h.b16 %v474
        %v598 = vunpack.c.l.b16 %v475
        %v599 = vunpack.c.l.b16 %v476
        %v600 = vunpack.c.h.b16 %v476
        %v601 = vunpack.c.l.b16 %v477
        %v602 = vunpack.c.l.b16 %v478
        %v603 = vunpack.c.h.b16 %v478
        %v604 = vunpack.c.l.b16 %v479
        %v605 = vunpack.c.l.b16 %v480
        %v606 = vunpack.c.h.b16 %v480
        %v607 = vunpack.c.l.b16 %v481
        %v608 = vunpack.c.l.b16 %v482
        %v609 = vunpack.c.h.b16 %v482
        %v610 = vunpack.c.l.b16 %v483
        %v611 = vunpack.c.l.b16 %v484
        %v612 = vunpack.c.h.b16 %v484
        %v613 = vunpack.c.l.b16 %v485
        %v614 = vunpack.c.l.b16 %v486
        %v615 = vunpack.c.h.b16 %v486
        %v616 = vunpack.c.l.b16 %v487
        %v617 = vunpack.c.l.b16 %v488
        %v618 = vunpack.c.h.b16 %v488
        %v619 = vunpack.c.l.b16 %v489
        %v620 = vunpack.c.l.b16 %v490
        %v621 = vunpack.c.h.b16 %v490
        %v622 = vunpack.c.l.b16 %v491
        %v623 = vunpack.c.l.b16 %v492
        %v624 = vunpack.c.h.b16 %v492
        %v625 = vunpack.c.l.b16 %v493
        %v626 = vunpack.c.l.b16 %v494
        %v627 = vunpack.c.h.b16 %v494
        %v628 = vunpack.c.l.b16 %v495
        %v629 = vunpack.c.l.b16 %v496
        %v630 = vunpack.c.h.b16 %v496
        %v631 = vunpack.c.l.b16 %v497
        %v632 = vunpack.c.l.b16 %v498
        %v633 = vunpack.c.h.b16 %v498
        %v634 = vunpack.c.l.b16 %v499
        %v635 = vunpack.c.l.b16 %v500
        %v636 = vunpack.c.h.b16 %v500
        %v637 = vunpack.c.l.b16 %v501
        %v638 = vpack.c.b16 %v593, %v590
        %v639 = vpack.c.b16 %v594, %v591
        %v640 = vpack.c.b16 %v595, %v592
        %v641 = vpack.c.b16 %v599, %v596
        %v642 = vpack.c.b16 %v600, %v597
        %v643 = vpack.c.b16 %v601, %v598
        %v644 = vpack.c.b16 %v605, %v602
        %v645 = vpack.c.b16 %v606, %v603
        %v646 = vpack.c.b16 %v607, %v604
        %v647 = vpack.c.b16 %v611, %v608
        %v648 = vpack.c.b16 %v612, %v609
        %v649 = vpack.c.b16 %v613, %v610
        %v650 = vpack.c.b16 %v617, %v614
        %v651 = vpack.c.b16 %v618, %v615
        %v652 = vpack.c.b16 %v619, %v616
        %v653 = vpack.c.b16 %v623, %v620
        %v654 = vpack.c.b16 %v624, %v621
        %v655 = vpack.c.b16 %v625, %v622
        %v656 = vpack.c.b16 %v629, %v626
        %v657 = vpack.c.b16 %v630, %v627
        %v658 = vpack.c.b16 %v631, %v628
        %v659 = vpack.c.b16 %v635, %v632
        %v660 = vpack.c.b16 %v636, %v633
        %v661 = vpack.c.b16 %v637, %v634
        %686 = vmatpush.bf16.msra.mxu0 %v659
        %687 = vmatpush.bf16.msra.mxu0 %v656
        %688 = vmatpush.bf16.msra.mxu0 %v653
        %689 = vmatpush.bf16.msra.mxu0 %v650
        %690 = vmatpush.bf16.msra.mxu0 %v647
        %691 = vmatpush.bf16.msra.mxu0 %v644
        %692 = vmatpush.bf16.msra.mxu0 %v641
        %693 = vmatpush.bf16.msra.mxu0 %v638
        %694 = vmatmul.bf16.gmra.mxu0 %v542
        %v695 = vpop.f32.mrf.mxu0
        %v696 = vadd.f32 %v504, %v695
        %v697 = vpop.f32.mrf.mxu0
        %v698 = vadd.f32 %v504, %v697
        %699 = vmatmul.bf16.gmra.mxu0 %v543
        %v700 = vpop.f32.mrf.mxu0
        %v701 = vadd.f32 %v504, %v700
        %v702 = vpop.f32.mrf.mxu0
        %v703 = vadd.f32 %v504, %v702
        %704 = vmatmul.bf16.gmra.mxu0 %v544
        %v705 = vpop.f32.mrf.mxu0
        %v706 = vadd.f32 %v504, %v705
        %v707 = vpop.f32.mrf.mxu0
        %v708 = vadd.f32 %v504, %v707
        %709 = vmatmul.bf16.gmra.mxu0 %v545
        %v710 = vpop.f32.mrf.mxu0
        %v711 = vadd.f32 %v504, %v710
        %v712 = vpop.f32.mrf.mxu0
        %v713 = vadd.f32 %v504, %v712
        %714 = vmatmul.bf16.gmra.mxu0 %v546
        %v715 = vpop.f32.mrf.mxu0
        %v716 = vadd.f32 %v504, %v715
        %v717 = vpop.f32.mrf.mxu0
        %v718 = vadd.f32 %v504, %v717
        %719 = vmatmul.bf16.gmra.mxu0 %v547
        %v720 = vpop.f32.mrf.mxu0
        %v721 = vadd.f32 %v504, %v720
        %v722 = vpop.f32.mrf.mxu0
        %v723 = vadd.f32 %v504, %v722
        %724 = vmatmul.bf16.gmra.mxu0 %v548
        %v725 = vpop.f32.mrf.mxu0
        %v726 = vadd.f32 %v504, %v725
        %v727 = vpop.f32.mrf.mxu0
        %v728 = vadd.f32 %v504, %v727
        %729 = vmatmul.bf16.gmra.mxu0 %v549
        %v730 = vpop.f32.mrf.mxu0
        %v731 = vadd.f32 %v504, %v730
        %v732 = vpop.f32.mrf.mxu0
        %v733 = vadd.f32 %v504, %v732
        %734 = vdwg.mxu0
        %735 = vmatpush.bf16.msra.mxu0 %v660
        %736 = vmatpush.bf16.msra.mxu0 %v657
        %737 = vmatpush.bf16.msra.mxu0 %v654
        %738 = vmatpush.bf16.msra.mxu0 %v651
        %739 = vmatpush.bf16.msra.mxu0 %v648
        %740 = vmatpush.bf16.msra.mxu0 %v645
        %741 = vmatpush.bf16.msra.mxu0 %v642
        %742 = vmatpush.bf16.msra.mxu0 %v639
        %743 = vmatmul.bf16.gmra.mxu0 %v542
        %v744 = vpop.f32.mrf.mxu0
        %v745 = vadd.f32 %v505, %v744
        %v746 = vpop.f32.mrf.mxu0
        %v747 = vadd.f32 %v505, %v746
        %748 = vmatmul.bf16.gmra.mxu0 %v543
        %v749 = vpop.f32.mrf.mxu0
        %v750 = vadd.f32 %v505, %v749
        %v751 = vpop.f32.mrf.mxu0
        %v752 = vadd.f32 %v505, %v751
        %753 = vmatmul.bf16.gmra.mxu0 %v544
        %v754 = vpop.f32.mrf.mxu0
        %v755 = vadd.f32 %v505, %v754
        %v756 = vpop.f32.mrf.mxu0
        %v757 = vadd.f32 %v505, %v756
        %758 = vmatmul.bf16.gmra.mxu0 %v545
        %v759 = vpop.f32.mrf.mxu0
        %v760 = vadd.f32 %v505, %v759
        %v761 = vpop.f32.mrf.mxu0
        %v762 = vadd.f32 %v505, %v761
        %763 = vmatmul.bf16.gmra.mxu0 %v546
        %v764 = vpop.f32.mrf.mxu0
        %v765 = vadd.f32 %v505, %v764
        %v766 = vpop.f32.mrf.mxu0
        %v767 = vadd.f32 %v505, %v766
        %768 = vmatmul.bf16.gmra.mxu0 %v547
        %v769 = vpop.f32.mrf.mxu0
        %v770 = vadd.f32 %v505, %v769
        %v771 = vpop.f32.mrf.mxu0
        %v772 = vadd.f32 %v505, %v771
        %773 = vmatmul.bf16.gmra.mxu0 %v548
        %v774 = vpop.f32.mrf.mxu0
        %v775 = vadd.f32 %v505, %v774
        %v776 = vpop.f32.mrf.mxu0
        %v777 = vadd.f32 %v505, %v776
        %778 = vmatmul.bf16.gmra.mxu0 %v549
        %v779 = vpop.f32.mrf.mxu0
        %v780 = vadd.f32 %v505, %v779
        %v781 = vpop.f32.mrf.mxu0
        %v782 = vadd.f32 %v505, %v781
        %783 = vdwg.mxu0
        %784 = vmatpush.bf16.msra.mxu0 %v661
        %785 = vmatpush.bf16.msra.mxu0 %v658
        %786 = vmatpush.bf16.msra.mxu0 %v655
        %787 = vmatpush.bf16.msra.mxu0 %v652
        %788 = vmatpush.bf16.msra.mxu0 %v649
        %789 = vmatpush.bf16.msra.mxu0 %v646
        %790 = vmatpush.bf16.msra.mxu0 %v643
        %791 = vmatpush.bf16.msra.mxu0 %v640
        %792 = vmatmul.bf16.gmra.mxu0 %v542
        %v793 = vpop.f32.mrf.mxu0
        %v794 = vadd.f32 %v506, %v793
        %v795 = vpop.f32.mrf.mxu0
        %v796 = vadd.f32 %v506, %v795
        %797 = vmatmul.bf16.gmra.mxu0 %v543
        %v798 = vpop.f32.mrf.mxu0
        %v799 = vadd.f32 %v506, %v798
        %v800 = vpop.f32.mrf.mxu0
        %v801 = vadd.f32 %v506, %v800
        %802 = vmatmul.bf16.gmra.mxu0 %v544
        %v803 = vpop.f32.mrf.mxu0
        %v804 = vadd.f32 %v506, %v803
        %v805 = vpop.f32.mrf.mxu0
        %v806 = vadd.f32 %v506, %v805
        %807 = vmatmul.bf16.gmra.mxu0 %v545
        %v808 = vpop.f32.mrf.mxu0
        %v809 = vadd.f32 %v506, %v808
        %v810 = vpop.f32.mrf.mxu0
        %v811 = vadd.f32 %v506, %v810
        %812 = vmatmul.bf16.gmra.mxu0 %v546
        %v813 = vpop.f32.mrf.mxu0
        %v814 = vadd.f32 %v506, %v813
        %v815 = vpop.f32.mrf.mxu0
        %v816 = vadd.f32 %v506, %v815
        %817 = vmatmul.bf16.gmra.mxu0 %v547
        %v818 = vpop.f32.mrf.mxu0
        %v819 = vadd.f32 %v506, %v818
        %v820 = vpop.f32.mrf.mxu0
        %v821 = vadd.f32 %v506, %v820
        %822 = vmatmul.bf16.gmra.mxu0 %v548
        %v823 = vpop.f32.mrf.mxu0
        %v824 = vadd.f32 %v506, %v823
        %v825 = vpop.f32.mrf.mxu0
        %v826 = vadd.f32 %v506, %v825
        %827 = vmatmul.bf16.gmra.mxu0 %v549
        %v828 = vpop.f32.mrf.mxu0
        %v829 = vadd.f32 %v506, %v828
        %v830 = vpop.f32.mrf.mxu0
        %v831 = vadd.f32 %v506, %v830
        %832 = vdwg.mxu0
        %v833 = vld [vmem:[#allocation9] sm:$0xff]
        %v834 = vld [vmem:[#allocation9 + $0x8] sm:$0xf]
        %v835 = vld [vmem:[#allocation9 + $0xc] sm:$0xff]
        %v836 = vld [vmem:[#allocation9 + $0x14] sm:$0xf]
        %v837 = vld [vmem:[#allocation9 + $0x18] sm:$0xff]
        %v838 = vld [vmem:[#allocation9 + $0x20] sm:$0xf]
        %v839 = vld [vmem:[#allocation9 + $0x24] sm:$0xff]
        %v840 = vld [vmem:[#allocation9 + $0x2c] sm:$0xf]
        %v841 = vld [vmem:[#allocation9 + $0x30] sm:$0xff]
        %v842 = vld [vmem:[#allocation9 + $0x38] sm:$0xf]
        %v843 = vld [vmem:[#allocation9 + $0x3c] sm:$0xff]
        %v844 = vld [vmem:[#allocation9 + $0x44] sm:$0xf]
        %v845 = vld [vmem:[#allocation9 + $0x48] sm:$0xff]
        %v846 = vld [vmem:[#allocation9 + $0x50] sm:$0xf]
        %v847 = vld [vmem:[#allocation9 + $0x54] sm:$0xff]
        %v848 = vld [vmem:[#allocation9 + $0x5c] sm:$0xf]
        %v849 = vld [vmem:[#allocation9 + $0x60] sm:$0xff]
        %v850 = vld [vmem:[#allocation9 + $0x68] sm:$0xf]
        %v851 = vld [vmem:[#allocation9 + $0x6c] sm:$0xff]
        %v852 = vld [vmem:[#allocation9 + $0x74] sm:$0xf]
        %v853 = vld [vmem:[#allocation9 + $0x78] sm:$0xff]
        %v854 = vld [vmem:[#allocation9 + $0x80] sm:$0xf]
        %v855 = vld [vmem:[#allocation9 + $0x84] sm:$0xff]
        %v856 = vld [vmem:[#allocation9 + $0x8c] sm:$0xf]
        %v857 = vld [vmem:[#allocation9 + $0x90] sm:$0xff]
        %v858 = vld [vmem:[#allocation9 + $0x98] sm:$0xf]
        %v859 = vld [vmem:[#allocation9 + $0x9c] sm:$0xff]
        %v860 = vld [vmem:[#allocation9 + $0xa4] sm:$0xf]
        %v861 = vld [vmem:[#allocation9 + $0xa8] sm:$0xff]
        %v862 = vld [vmem:[#allocation9 + $0xb0] sm:$0xf]
        %v863 = vld [vmem:[#allocation9 + $0xb4] sm:$0xff]
        %v864 = vld [vmem:[#allocation9 + $0xbc] sm:$0xf]
        %v865 = vld [vmem:[%s5] sm:$0x1]
        %v867 = vperm.slane %v865, 0
        %v869 = vld [vmem:[#allocation2] sm:$0xff]
        %v870 = vld [vmem:[#allocation2 + $0x8] sm:$0xff]
        %v871 = vpack.c.bf16 %v870, %v869
        %v904 = vunpack.c.l.b16 %v833
        %v905 = vunpack.c.h.b16 %v833
        %v906 = vunpack.c.l.b16 %v834
        %v907 = vunpack.c.l.b16 %v835
        %v908 = vunpack.c.h.b16 %v835
        %v909 = vunpack.c.l.b16 %v836
        %v910 = vunpack.c.l.b16 %v837
        %v911 = vunpack.c.h.b16 %v837
        %v912 = vunpack.c.l.b16 %v838
        %v913 = vunpack.c.l.b16 %v839
        %v914 = vunpack.c.h.b16 %v839
        %v915 = vunpack.c.l.b16 %v840
        %v916 = vunpack.c.l.b16 %v841
        %v917 = vunpack.c.h.b16 %v841
        %v918 = vunpack.c.l.b16 %v842
        %v919 = vunpack.c.l.b16 %v843
        %v920 = vunpack.c.h.b16 %v843
        %v921 = vunpack.c.l.b16 %v844
        %v922 = vunpack.c.l.b16 %v845
        %v923 = vunpack.c.h.b16 %v845
        %v924 = vunpack.c.l.b16 %v846
        %v925 = vunpack.c.l.b16 %v847
        %v926 = vunpack.c.h.b16 %v847
        %v927 = vunpack.c.l.b16 %v848
        %v928 = vunpack.c.l.b16 %v849
        %v929 = vunpack.c.h.b16 %v849
        %v930 = vunpack.c.l.b16 %v850
        %v931 = vunpack.c.l.b16 %v851
        %v932 = vunpack.c.h.b16 %v851
        %v933 = vunpack.c.l.b16 %v852
        %v934 = vunpack.c.l.b16 %v853
        %v935 = vunpack.c.h.b16 %v853
        %v936 = vunpack.c.l.b16 %v854
        %v937 = vunpack.c.l.b16 %v855
        %v938 = vunpack.c.h.b16 %v855
        %v939 = vunpack.c.l.b16 %v856
        %v940 = vunpack.c.l.b16 %v857
        %v941 = vunpack.c.h.b16 %v857
        %v942 = vunpack.c.l.b16 %v858
        %v943 = vunpack.c.l.b16 %v859
        %v944 = vunpack.c.h.b16 %v859
        %v945 = vunpack.c.l.b16 %v860
        %v946 = vunpack.c.l.b16 %v861
        %v947 = vunpack.c.h.b16 %v861
        %v948 = vunpack.c.l.b16 %v862
        %v949 = vunpack.c.l.b16 %v863
        %v950 = vunpack.c.h.b16 %v863
        %v951 = vunpack.c.l.b16 %v864
        %v952 = vpack.c.b16 %v907, %v904
        %v953 = vpack.c.b16 %v908, %v905
        %v954 = vpack.c.b16 %v909, %v906
        %v955 = vpack.c.b16 %v913, %v910
        %v956 = vpack.c.b16 %v914, %v911
        %v957 = vpack.c.b16 %v915, %v912
        %v958 = vpack.c.b16 %v919, %v916
        %v959 = vpack.c.b16 %v920, %v917
        %v960 = vpack.c.b16 %v921, %v918
        %v961 = vpack.c.b16 %v925, %v922
        %v962 = vpack.c.b16 %v926, %v923
        %v963 = vpack.c.b16 %v927, %v924
        %v964 = vpack.c.b16 %v931, %v928
        %v965 = vpack.c.b16 %v932, %v929
        %v966 = vpack.c.b16 %v933, %v930
        %v967 = vpack.c.b16 %v937, %v934
        %v968 = vpack.c.b16 %v938, %v935
        %v969 = vpack.c.b16 %v939, %v936
        %v970 = vpack.c.b16 %v943, %v940
        %v971 = vpack.c.b16 %v944, %v941
        %v972 = vpack.c.b16 %v945, %v942
        %v973 = vpack.c.b16 %v949, %v946
        %v974 = vpack.c.b16 %v950, %v947
        %v975 = vpack.c.b16 %v951, %v948
        %1000 = vmatpush.bf16.msra.mxu0 %v973
        %1001 = vmatpush.bf16.msra.mxu0 %v970
        %1002 = vmatpush.bf16.msra.mxu0 %v967
        %1003 = vmatpush.bf16.msra.mxu0 %v964
        %1004 = vmatpush.bf16.msra.mxu0 %v961
        %1005 = vmatpush.bf16.msra.mxu0 %v958
        %1006 = vmatpush.bf16.msra.mxu0 %v955
        %1007 = vmatpush.bf16.msra.mxu0 %v952
        %1008 = vmatmul.bf16.gmra.mxu0 %v871
        %v1009 = vpop.f32.mrf.mxu0
        %v1010 = vadd.f32 0.0, %v1009
        %v1011 = vpop.f32.mrf.mxu0
        %v1012 = vadd.f32 0.0, %v1011
        %1013 = vdwg.mxu0
        %1014 = vmatpush.bf16.msra.mxu0 %v974
        %1015 = vmatpush.bf16.msra.mxu0 %v971
        %1016 = vmatpush.bf16.msra.mxu0 %v968
        %1017 = vmatpush.bf16.msra.mxu0 %v965
        %1018 = vmatpush.bf16.msra.mxu0 %v962
        %1019 = vmatpush.bf16.msra.mxu0 %v959
        %1020 = vmatpush.bf16.msra.mxu0 %v956
        %1021 = vmatpush.bf16.msra.mxu0 %v953
        %1022 = vmatmul.bf16.gmra.mxu0 %v871
        %v1023 = vpop.f32.mrf.mxu0
        %v1024 = vadd.f32 0.0, %v1023
        %v1025 = vpop.f32.mrf.mxu0
        %v1026 = vadd.f32 0.0, %v1025
        %1027 = vdwg.mxu0
        %1028 = vmatpush.bf16.msra.mxu0 %v975
        %1029 = vmatpush.bf16.msra.mxu0 %v972
        %1030 = vmatpush.bf16.msra.mxu0 %v969
        %1031 = vmatpush.bf16.msra.mxu0 %v966
        %1032 = vmatpush.bf16.msra.mxu0 %v963
        %1033 = vmatpush.bf16.msra.mxu0 %v960
        %1034 = vmatpush.bf16.msra.mxu0 %v957
        %1035 = vmatpush.bf16.msra.mxu0 %v954
        %1036 = vmatmul.bf16.gmra.mxu0 %v871
        %v1037 = vpop.f32.mrf.mxu0
        %v1038 = vadd.f32 0.0, %v1037
        %v1039 = vpop.f32.mrf.mxu0
        %v1040 = vadd.f32 0.0, %v1039
        %1041 = vdwg.mxu0
        %v1042 = vadd.f32 %v696, %v1010
        %v1043 = vadd.f32 %v698, %v1012
        %v1044 = vxor.u32 %v1042, 2147483648
        %v1045 = vxor.u32 %v1043, 2147483648
        %v1046 = vmul.f32 %v1044, 1.442695
        %v1047 = vpow.pop %v1046
        %v1048 = vmul.f32 %v1045, 1.442695
        %v1049 = vpow.pop %v1048
        %v1050 = vadd.f32 %v1047, 1.0
        %v1051 = vadd.f32 %v1049, 1.0
        %v1052 = vrcp.pop %v1050
        %v1053 = vmul.f32 %v1050, %v1052
        %v1054 = vsub.f32 1.0, %v1053
        %v1055 = vmul.f32 %v1052, %v1054
        %v1056 = vadd.f32 %v1052, %v1055
        %vm1057 = vweird.f32 %v1050
        %vm1058 = vweird.f32 %v1052
        %vm1059 = vmor %vm1057, %vm1058
        %v1060 = vsel %vm1059, %v1052, %v1056
        %v1061 = vand.u32 2147483647, %v1050
        %vm1062 = vcmp.eq.f32.partialorder %v1061, 8.507059e+37
        %v1063 = vand.u32 %v1050, 2147483648
        %v1064 = vor.u32 1.1754944e-38, %v1063
        %v1065 = vsel %vm1062, %v1064, %v1060
        %v1066 = vmul.f32 1.0, %v1065
        %v1067 = vrcp.pop %v1051
        %v1068 = vmul.f32 %v1051, %v1067
        %v1069 = vsub.f32 1.0, %v1068
        %v1070 = vmul.f32 %v1067, %v1069
        %v1071 = vadd.f32 %v1067, %v1070
        %vm1072 = vweird.f32 %v1051
        %vm1073 = vweird.f32 %v1067
        %vm1074 = vmor %vm1072, %vm1073
        %v1075 = vsel %vm1074, %v1067, %v1071
        %v1076 = vand.u32 2147483647, %v1051
        %vm1077 = vcmp.eq.f32.partialorder %v1076, 8.507059e+37
        %v1078 = vand.u32 %v1051, 2147483648
        %v1079 = vor.u32 1.1754944e-38, %v1078
        %v1080 = vsel %vm1077, %v1079, %v1075
        %v1081 = vmul.f32 1.0, %v1080
        %v1082 = vadd.f32 %v745, %v1024
        %v1083 = vadd.f32 %v747, %v1026
        %v1084 = vxor.u32 %v1082, 2147483648
        %v1085 = vxor.u32 %v1083, 2147483648
        %v1086 = vmul.f32 %v1084, 1.442695
        %v1087 = vpow.pop %v1086
        %v1088 = vmul.f32 %v1085, 1.442695
        %v1089 = vpow.pop %v1088
        %v1090 = vadd.f32 %v1087, 1.0
        %v1091 = vadd.f32 %v1089, 1.0
        %v1092 = vrcp.pop %v1090
        %v1093 = vmul.f32 %v1090, %v1092
        %v1094 = vsub.f32 1.0, %v1093
        %v1095 = vmul.f32 %v1092, %v1094
        %v1096 = vadd.f32 %v1092, %v1095
        %vm1097 = vweird.f32 %v1090
        %vm1098 = vweird.f32 %v1092
        %vm1099 = vmor %vm1097, %vm1098
        %v1100 = vsel %vm1099, %v1092, %v1096
        %v1101 = vand.u32 2147483647, %v1090
        %vm1102 = vcmp.eq.f32.partialorder %v1101, 8.507059e+37
        %v1103 = vand.u32 %v1090, 2147483648
        %v1104 = vor.u32 1.1754944e-38, %v1103
        %v1105 = vsel %vm1102, %v1104, %v1100
        %v1106 = vmul.f32 1.0, %v1105
        %v1107 = vrcp.pop %v1091
        %v1108 = vmul.f32 %v1091, %v1107
        %v1109 = vsub.f32 1.0, %v1108
        %v1110 = vmul.f32 %v1107, %v1109
        %v1111 = vadd.f32 %v1107, %v1110
        %vm1112 = vweird.f32 %v1091
        %vm1113 = vweird.f32 %v1107
        %vm1114 = vmor %vm1112, %vm1113
        %v1115 = vsel %vm1114, %v1107, %v1111
        %v1116 = vand.u32 2147483647, %v1091
        %vm1117 = vcmp.eq.f32.partialorder %v1116, 8.507059e+37
        %v1118 = vand.u32 %v1091, 2147483648
        %v1119 = vor.u32 1.1754944e-38, %v1118
        %v1120 = vsel %vm1117, %v1119, %v1115
        %v1121 = vmul.f32 1.0, %v1120
        %v1122 = vadd.f32 %v1038, %v867
        %v1123 = vadd.f32 %v1040, %v867
        %v1124 = vmul.f32 %v1066, %v1122
        %v1125 = vmul.f32 %v1081, %v1123
        %v1126 = vadd.f32 %v794, %v1124
        %v1127 = vadd.f32 %v796, %v1125
        %v1128 = vtanh.pop %v1126
        %v1129 = vtanh.pop %v1127
        %v1130 = vsub.f32 1.0, %v1106
        %v1131 = vsub.f32 1.0, %v1121
        %v1132 = vmul.f32 %v1130, %v1128
        %v1133 = vmul.f32 %v1131, %v1129
        %v1134 = vmul.f32 %v1106, %v869
        %v1135 = vmul.f32 %v1121, %v870
        %v1136 = vadd.f32 %v1132, %v1134
        %v1137 = vadd.f32 %v1133, %v1135
        %v1138 = vpack.c.bf16 %v1137, %v1136
        %1139 = vmatpush.bf16.msra.mxu0 %v973
        %1140 = vmatpush.bf16.msra.mxu0 %v970
        %1141 = vmatpush.bf16.msra.mxu0 %v967
        %1142 = vmatpush.bf16.msra.mxu0 %v964
        %1143 = vmatpush.bf16.msra.mxu0 %v961
        %1144 = vmatpush.bf16.msra.mxu0 %v958
        %1145 = vmatpush.bf16.msra.mxu0 %v955
        %1146 = vmatpush.bf16.msra.mxu0 %v952
        %1147 = vmatmul.bf16.gmra.mxu0 %v1138
        %v1148 = vpop.f32.mrf.mxu0
        %v1149 = vadd.f32 0.0, %v1148
        %v1150 = vpop.f32.mrf.mxu0
        %v1151 = vadd.f32 0.0, %v1150
        %1152 = vdwg.mxu0
        %1153 = vmatpush.bf16.msra.mxu0 %v974
        %1154 = vmatpush.bf16.msra.mxu0 %v971
        %1155 = vmatpush.bf16.msra.mxu0 %v968
        %1156 = vmatpush.bf16.msra.mxu0 %v965
        %1157 = vmatpush.bf16.msra.mxu0 %v962
        %1158 = vmatpush.bf16.msra.mxu0 %v959
        %1159 = vmatpush.bf16.msra.mxu0 %v956
        %1160 = vmatpush.bf16.msra.mxu0 %v953
        %1161 = vmatmul.bf16.gmra.mxu0 %v1138
        %v1162 = vpop.f32.mrf.mxu0
        %v1163 = vadd.f32 0.0, %v1162
        %v1164 = vpop.f32.mrf.mxu0
        %v1165 = vadd.f32 0.0, %v1164
        %1166 = vdwg.mxu0
        %1167 = vmatpush.bf16.msra.mxu0 %v975
        %1168 = vmatpush.bf16.msra.mxu0 %v972
        %1169 = vmatpush.bf16.msra.mxu0 %v969
        %1170 = vmatpush.bf16.msra.mxu0 %v966
        %1171 = vmatpush.bf16.msra.mxu0 %v963
        %1172 = vmatpush.bf16.msra.mxu0 %v960
        %1173 = vmatpush.bf16.msra.mxu0 %v957
        %1174 = vmatpush.bf16.msra.mxu0 %v954
        %1175 = vmatmul.bf16.gmra.mxu0 %v1138
        %v1176 = vpop.f32.mrf.mxu0
        %v1177 = vadd.f32 0.0, %v1176
        %v1178 = vpop.f32.mrf.mxu0
        %v1179 = vadd.f32 0.0, %v1178
        %1180 = vdwg.mxu0
        %v1181 = vadd.f32 %v701, %v1149
        %v1182 = vadd.f32 %v703, %v1151
        %v1183 = vxor.u32 %v1181, 2147483648
        %v1184 = vxor.u32 %v1182, 2147483648
        %v1185 = vmul.f32 %v1183, 1.442695
        %v1186 = vpow.pop %v1185
        %v1187 = vmul.f32 %v1184, 1.442695
        %v1188 = vpow.pop %v1187
        %v1189 = vadd.f32 %v1186, 1.0
        %v1190 = vadd.f32 %v1188, 1.0
        %v1191 = vrcp.pop %v1189
        %v1192 = vmul.f32 %v1189, %v1191
        %v1193 = vsub.f32 1.0, %v1192
        %v1194 = vmul.f32 %v1191, %v1193
        %v1195 = vadd.f32 %v1191, %v1194
        %vm1196 = vweird.f32 %v1189
        %vm1197 = vweird.f32 %v1191
        %vm1198 = vmor %vm1196, %vm1197
        %v1199 = vsel %vm1198, %v1191, %v1195
        %v1200 = vand.u32 2147483647, %v1189
        %vm1201 = vcmp.eq.f32.partialorder %v1200, 8.507059e+37
        %v1202 = vand.u32 %v1189, 2147483648
        %v1203 = vor.u32 1.1754944e-38, %v1202
        %v1204 = vsel %vm1201, %v1203, %v1199
        %v1205 = vmul.f32 1.0, %v1204
        %v1206 = vrcp.pop %v1190
        %v1207 = vmul.f32 %v1190, %v1206
        %v1208 = vsub.f32 1.0, %v1207
        %v1209 = vmul.f32 %v1206, %v1208
        %v1210 = vadd.f32 %v1206, %v1209
        %vm1211 = vweird.f32 %v1190
        %vm1212 = vweird.f32 %v1206
        %vm1213 = vmor %vm1211, %vm1212
        %v1214 = vsel %vm1213, %v1206, %v1210
        %v1215 = vand.u32 2147483647, %v1190
        %vm1216 = vcmp.eq.f32.partialorder %v1215, 8.507059e+37
        %v1217 = vand.u32 %v1190, 2147483648
        %v1218 = vor.u32 1.1754944e-38, %v1217
        %v1219 = vsel %vm1216, %v1218, %v1214
        %v1220 = vmul.f32 1.0, %v1219
        %v1221 = vadd.f32 %v750, %v1163
        %v1222 = vadd.f32 %v752, %v1165
        %v1223 = vxor.u32 %v1221, 2147483648
        %v1224 = vxor.u32 %v1222, 2147483648
        %v1225 = vmul.f32 %v1223, 1.442695
        %v1226 = vpow.pop %v1225
        %v1227 = vmul.f32 %v1224, 1.442695
        %v1228 = vpow.pop %v1227
        %v1229 = vadd.f32 %v1226, 1.0
        %v1230 = vadd.f32 %v1228, 1.0
        %v1231 = vrcp.pop %v1229
        %v1232 = vmul.f32 %v1229, %v1231
        %v1233 = vsub.f32 1.0, %v1232
        %v1234 = vmul.f32 %v1231, %v1233
        %v1235 = vadd.f32 %v1231, %v1234
        %vm1236 = vweird.f32 %v1229
        %vm1237 = vweird.f32 %v1231
        %vm1238 = vmor %vm1236, %vm1237
        %v1239 = vsel %vm1238, %v1231, %v1235
        %v1240 = vand.u32 2147483647, %v1229
        %vm1241 = vcmp.eq.f32.partialorder %v1240, 8.507059e+37
        %v1242 = vand.u32 %v1229, 2147483648
        %v1243 = vor.u32 1.1754944e-38, %v1242
        %v1244 = vsel %vm1241, %v1243, %v1239
        %v1245 = vmul.f32 1.0, %v1244
        %v1246 = vrcp.pop %v1230
        %v1247 = vmul.f32 %v1230, %v1246
        %v1248 = vsub.f32 1.0, %v1247
        %v1249 = vmul.f32 %v1246, %v1248
        %v1250 = vadd.f32 %v1246, %v1249
        %vm1251 = vweird.f32 %v1230
        %vm1252 = vweird.f32 %v1246
        %vm1253 = vmor %vm1251, %vm1252
        %v1254 = vsel %vm1253, %v1246, %v1250
        %v1255 = vand.u32 2147483647, %v1230
        %vm1256 = vcmp.eq.f32.partialorder %v1255, 8.507059e+37
        %v1257 = vand.u32 %v1230, 2147483648
        %v1258 = vor.u32 1.1754944e-38, %v1257
        %v1259 = vsel %vm1256, %v1258, %v1254
        %v1260 = vmul.f32 1.0, %v1259
        %v1261 = vadd.f32 %v1177, %v867
        %v1262 = vadd.f32 %v1179, %v867
        %v1263 = vmul.f32 %v1205, %v1261
        %v1264 = vmul.f32 %v1220, %v1262
        %v1265 = vadd.f32 %v799, %v1263
        %v1266 = vadd.f32 %v801, %v1264
        %v1267 = vtanh.pop %v1265
        %v1268 = vtanh.pop %v1266
        %v1269 = vsub.f32 1.0, %v1245
        %v1270 = vsub.f32 1.0, %v1260
        %v1271 = vmul.f32 %v1269, %v1267
        %v1272 = vmul.f32 %v1270, %v1268
        %v1273 = vmul.f32 %v1245, %v1136
        %v1274 = vmul.f32 %v1260, %v1137
        %v1275 = vadd.f32 %v1271, %v1273
        %v1276 = vadd.f32 %v1272, %v1274
        %v1277 = vpack.c.bf16 %v1276, %v1275
        %1278 = vmatpush.bf16.msra.mxu0 %v973
        %1279 = vmatpush.bf16.msra.mxu0 %v970
        %1280 = vmatpush.bf16.msra.mxu0 %v967
        %1281 = vmatpush.bf16.msra.mxu0 %v964
        %1282 = vmatpush.bf16.msra.mxu0 %v961
        %1283 = vmatpush.bf16.msra.mxu0 %v958
        %1284 = vmatpush.bf16.msra.mxu0 %v955
        %1285 = vmatpush.bf16.msra.mxu0 %v952
        %1286 = vmatmul.bf16.gmra.mxu0 %v1277
        %v1287 = vpop.f32.mrf.mxu0
        %v1288 = vadd.f32 0.0, %v1287
        %v1289 = vpop.f32.mrf.mxu0
        %v1290 = vadd.f32 0.0, %v1289
        %1291 = vdwg.mxu0
        %1292 = vmatpush.bf16.msra.mxu0 %v974
        %1293 = vmatpush.bf16.msra.mxu0 %v971
        %1294 = vmatpush.bf16.msra.mxu0 %v968
        %1295 = vmatpush.bf16.msra.mxu0 %v965
        %1296 = vmatpush.bf16.msra.mxu0 %v962
        %1297 = vmatpush.bf16.msra.mxu0 %v959
        %1298 = vmatpush.bf16.msra.mxu0 %v956
        %1299 = vmatpush.bf16.msra.mxu0 %v953
        %1300 = vmatmul.bf16.gmra.mxu0 %v1277
        %v1301 = vpop.f32.mrf.mxu0
        %v1302 = vadd.f32 0.0, %v1301
        %v1303 = vpop.f32.mrf.mxu0
        %v1304 = vadd.f32 0.0, %v1303
        %1305 = vdwg.mxu0
        %1306 = vmatpush.bf16.msra.mxu0 %v975
        %1307 = vmatpush.bf16.msra.mxu0 %v972
        %1308 = vmatpush.bf16.msra.mxu0 %v969
        %1309 = vmatpush.bf16.msra.mxu0 %v966
        %1310 = vmatpush.bf16.msra.mxu0 %v963
        %1311 = vmatpush.bf16.msra.mxu0 %v960
        %1312 = vmatpush.bf16.msra.mxu0 %v957
        %1313 = vmatpush.bf16.msra.mxu0 %v954
        %1314 = vmatmul.bf16.gmra.mxu0 %v1277
        %v1315 = vpop.f32.mrf.mxu0
        %v1316 = vadd.f32 0.0, %v1315
        %v1317 = vpop.f32.mrf.mxu0
        %v1318 = vadd.f32 0.0, %v1317
        %1319 = vdwg.mxu0
        %v1320 = vadd.f32 %v706, %v1288
        %v1321 = vadd.f32 %v708, %v1290
        %v1322 = vxor.u32 %v1320, 2147483648
        %v1323 = vxor.u32 %v1321, 2147483648
        %v1324 = vmul.f32 %v1322, 1.442695
        %v1325 = vpow.pop %v1324
        %v1326 = vmul.f32 %v1323, 1.442695
        %v1327 = vpow.pop %v1326
        %v1328 = vadd.f32 %v1325, 1.0
        %v1329 = vadd.f32 %v1327, 1.0
        %v1330 = vrcp.pop %v1328
        %v1331 = vmul.f32 %v1328, %v1330
        %v1332 = vsub.f32 1.0, %v1331
        %v1333 = vmul.f32 %v1330, %v1332
        %v1334 = vadd.f32 %v1330, %v1333
        %vm1335 = vweird.f32 %v1328
        %vm1336 = vweird.f32 %v1330
        %vm1337 = vmor %vm1335, %vm1336
        %v1338 = vsel %vm1337, %v1330, %v1334
        %v1339 = vand.u32 2147483647, %v1328
        %vm1340 = vcmp.eq.f32.partialorder %v1339, 8.507059e+37
        %v1341 = vand.u32 %v1328, 2147483648
        %v1342 = vor.u32 1.1754944e-38, %v1341
        %v1343 = vsel %vm1340, %v1342, %v1338
        %v1344 = vmul.f32 1.0, %v1343
        %v1345 = vrcp.pop %v1329
        %v1346 = vmul.f32 %v1329, %v1345
        %v1347 = vsub.f32 1.0, %v1346
        %v1348 = vmul.f32 %v1345, %v1347
        %v1349 = vadd.f32 %v1345, %v1348
        %vm1350 = vweird.f32 %v1329
        %vm1351 = vweird.f32 %v1345
        %vm1352 = vmor %vm1350, %vm1351
        %v1353 = vsel %vm1352, %v1345, %v1349
        %v1354 = vand.u32 2147483647, %v1329
        %vm1355 = vcmp.eq.f32.partialorder %v1354, 8.507059e+37
        %v1356 = vand.u32 %v1329, 2147483648
        %v1357 = vor.u32 1.1754944e-38, %v1356
        %v1358 = vsel %vm1355, %v1357, %v1353
        %v1359 = vmul.f32 1.0, %v1358
        %v1360 = vadd.f32 %v755, %v1302
        %v1361 = vadd.f32 %v757, %v1304
        %v1362 = vxor.u32 %v1360, 2147483648
        %v1363 = vxor.u32 %v1361, 2147483648
        %v1364 = vmul.f32 %v1362, 1.442695
        %v1365 = vpow.pop %v1364
        %v1366 = vmul.f32 %v1363, 1.442695
        %v1367 = vpow.pop %v1366
        %v1368 = vadd.f32 %v1365, 1.0
        %v1369 = vadd.f32 %v1367, 1.0
        %v1370 = vrcp.pop %v1368
        %v1371 = vmul.f32 %v1368, %v1370
        %v1372 = vsub.f32 1.0, %v1371
        %v1373 = vmul.f32 %v1370, %v1372
        %v1374 = vadd.f32 %v1370, %v1373
        %vm1375 = vweird.f32 %v1368
        %vm1376 = vweird.f32 %v1370
        %vm1377 = vmor %vm1375, %vm1376
        %v1378 = vsel %vm1377, %v1370, %v1374
        %v1379 = vand.u32 2147483647, %v1368
        %vm1380 = vcmp.eq.f32.partialorder %v1379, 8.507059e+37
        %v1381 = vand.u32 %v1368, 2147483648
        %v1382 = vor.u32 1.1754944e-38, %v1381
        %v1383 = vsel %vm1380, %v1382, %v1378
        %v1384 = vmul.f32 1.0, %v1383
        %v1385 = vrcp.pop %v1369
        %v1386 = vmul.f32 %v1369, %v1385
        %v1387 = vsub.f32 1.0, %v1386
        %v1388 = vmul.f32 %v1385, %v1387
        %v1389 = vadd.f32 %v1385, %v1388
        %vm1390 = vweird.f32 %v1369
        %vm1391 = vweird.f32 %v1385
        %vm1392 = vmor %vm1390, %vm1391
        %v1393 = vsel %vm1392, %v1385, %v1389
        %v1394 = vand.u32 2147483647, %v1369
        %vm1395 = vcmp.eq.f32.partialorder %v1394, 8.507059e+37
        %v1396 = vand.u32 %v1369, 2147483648
        %v1397 = vor.u32 1.1754944e-38, %v1396
        %v1398 = vsel %vm1395, %v1397, %v1393
        %v1399 = vmul.f32 1.0, %v1398
        %v1400 = vadd.f32 %v1316, %v867
        %v1401 = vadd.f32 %v1318, %v867
        %v1402 = vmul.f32 %v1344, %v1400
        %v1403 = vmul.f32 %v1359, %v1401
        %v1404 = vadd.f32 %v804, %v1402
        %v1405 = vadd.f32 %v806, %v1403
        %v1406 = vtanh.pop %v1404
        %v1407 = vtanh.pop %v1405
        %v1408 = vsub.f32 1.0, %v1384
        %v1409 = vsub.f32 1.0, %v1399
        %v1410 = vmul.f32 %v1408, %v1406
        %v1411 = vmul.f32 %v1409, %v1407
        %v1412 = vmul.f32 %v1384, %v1275
        %v1413 = vmul.f32 %v1399, %v1276
        %v1414 = vadd.f32 %v1410, %v1412
        %v1415 = vadd.f32 %v1411, %v1413
        %v1416 = vpack.c.bf16 %v1415, %v1414
        %1417 = vmatpush.bf16.msra.mxu0 %v973
        %1418 = vmatpush.bf16.msra.mxu0 %v970
        %1419 = vmatpush.bf16.msra.mxu0 %v967
        %1420 = vmatpush.bf16.msra.mxu0 %v964
        %1421 = vmatpush.bf16.msra.mxu0 %v961
        %1422 = vmatpush.bf16.msra.mxu0 %v958
        %1423 = vmatpush.bf16.msra.mxu0 %v955
        %1424 = vmatpush.bf16.msra.mxu0 %v952
        %1425 = vmatmul.bf16.gmra.mxu0 %v1416
        %v1426 = vpop.f32.mrf.mxu0
        %v1427 = vadd.f32 0.0, %v1426
        %v1428 = vpop.f32.mrf.mxu0
        %v1429 = vadd.f32 0.0, %v1428
        %1430 = vdwg.mxu0
        %1431 = vmatpush.bf16.msra.mxu0 %v974
        %1432 = vmatpush.bf16.msra.mxu0 %v971
        %1433 = vmatpush.bf16.msra.mxu0 %v968
        %1434 = vmatpush.bf16.msra.mxu0 %v965
        %1435 = vmatpush.bf16.msra.mxu0 %v962
        %1436 = vmatpush.bf16.msra.mxu0 %v959
        %1437 = vmatpush.bf16.msra.mxu0 %v956
        %1438 = vmatpush.bf16.msra.mxu0 %v953
        %1439 = vmatmul.bf16.gmra.mxu0 %v1416
        %v1440 = vpop.f32.mrf.mxu0
        %v1441 = vadd.f32 0.0, %v1440
        %v1442 = vpop.f32.mrf.mxu0
        %v1443 = vadd.f32 0.0, %v1442
        %1444 = vdwg.mxu0
        %1445 = vmatpush.bf16.msra.mxu0 %v975
        %1446 = vmatpush.bf16.msra.mxu0 %v972
        %1447 = vmatpush.bf16.msra.mxu0 %v969
        %1448 = vmatpush.bf16.msra.mxu0 %v966
        %1449 = vmatpush.bf16.msra.mxu0 %v963
        %1450 = vmatpush.bf16.msra.mxu0 %v960
        %1451 = vmatpush.bf16.msra.mxu0 %v957
        %1452 = vmatpush.bf16.msra.mxu0 %v954
        %1453 = vmatmul.bf16.gmra.mxu0 %v1416
        %v1454 = vpop.f32.mrf.mxu0
        %v1455 = vadd.f32 0.0, %v1454
        %v1456 = vpop.f32.mrf.mxu0
        %v1457 = vadd.f32 0.0, %v1456
        %1458 = vdwg.mxu0
        %v1459 = vadd.f32 %v711, %v1427
        %v1460 = vadd.f32 %v713, %v1429
        %v1461 = vxor.u32 %v1459, 2147483648
        %v1462 = vxor.u32 %v1460, 2147483648
        %v1463 = vmul.f32 %v1461, 1.442695
        %v1464 = vpow.pop %v1463
        %v1465 = vmul.f32 %v1462, 1.442695
        %v1466 = vpow.pop %v1465
        %v1467 = vadd.f32 %v1464, 1.0
        %v1468 = vadd.f32 %v1466, 1.0
        %v1469 = vrcp.pop %v1467
        %v1470 = vmul.f32 %v1467, %v1469
        %v1471 = vsub.f32 1.0, %v1470
        %v1472 = vmul.f32 %v1469, %v1471
        %v1473 = vadd.f32 %v1469, %v1472
        %vm1474 = vweird.f32 %v1467
        %vm1475 = vweird.f32 %v1469
        %vm1476 = vmor %vm1474, %vm1475
        %v1477 = vsel %vm1476, %v1469, %v1473
        %v1478 = vand.u32 2147483647, %v1467
        %vm1479 = vcmp.eq.f32.partialorder %v1478, 8.507059e+37
        %v1480 = vand.u32 %v1467, 2147483648
        %v1481 = vor.u32 1.1754944e-38, %v1480
        %v1482 = vsel %vm1479, %v1481, %v1477
        %v1483 = vmul.f32 1.0, %v1482
        %v1484 = vrcp.pop %v1468
        %v1485 = vmul.f32 %v1468, %v1484
        %v1486 = vsub.f32 1.0, %v1485
        %v1487 = vmul.f32 %v1484, %v1486
        %v1488 = vadd.f32 %v1484, %v1487
        %vm1489 = vweird.f32 %v1468
        %vm1490 = vweird.f32 %v1484
        %vm1491 = vmor %vm1489, %vm1490
        %v1492 = vsel %vm1491, %v1484, %v1488
        %v1493 = vand.u32 2147483647, %v1468
        %vm1494 = vcmp.eq.f32.partialorder %v1493, 8.507059e+37
        %v1495 = vand.u32 %v1468, 2147483648
        %v1496 = vor.u32 1.1754944e-38, %v1495
        %v1497 = vsel %vm1494, %v1496, %v1492
        %v1498 = vmul.f32 1.0, %v1497
        %v1499 = vadd.f32 %v760, %v1441
        %v1500 = vadd.f32 %v762, %v1443
        %v1501 = vxor.u32 %v1499, 2147483648
        %v1502 = vxor.u32 %v1500, 2147483648
        %v1503 = vmul.f32 %v1501, 1.442695
        %v1504 = vpow.pop %v1503
        %v1505 = vmul.f32 %v1502, 1.442695
        %v1506 = vpow.pop %v1505
        %v1507 = vadd.f32 %v1504, 1.0
        %v1508 = vadd.f32 %v1506, 1.0
        %v1509 = vrcp.pop %v1507
        %v1510 = vmul.f32 %v1507, %v1509
        %v1511 = vsub.f32 1.0, %v1510
        %v1512 = vmul.f32 %v1509, %v1511
        %v1513 = vadd.f32 %v1509, %v1512
        %vm1514 = vweird.f32 %v1507
        %vm1515 = vweird.f32 %v1509
        %vm1516 = vmor %vm1514, %vm1515
        %v1517 = vsel %vm1516, %v1509, %v1513
        %v1518 = vand.u32 2147483647, %v1507
        %vm1519 = vcmp.eq.f32.partialorder %v1518, 8.507059e+37
        %v1520 = vand.u32 %v1507, 2147483648
        %v1521 = vor.u32 1.1754944e-38, %v1520
        %v1522 = vsel %vm1519, %v1521, %v1517
        %v1523 = vmul.f32 1.0, %v1522
        %v1524 = vrcp.pop %v1508
        %v1525 = vmul.f32 %v1508, %v1524
        %v1526 = vsub.f32 1.0, %v1525
        %v1527 = vmul.f32 %v1524, %v1526
        %v1528 = vadd.f32 %v1524, %v1527
        %vm1529 = vweird.f32 %v1508
        %vm1530 = vweird.f32 %v1524
        %vm1531 = vmor %vm1529, %vm1530
        %v1532 = vsel %vm1531, %v1524, %v1528
        %v1533 = vand.u32 2147483647, %v1508
        %vm1534 = vcmp.eq.f32.partialorder %v1533, 8.507059e+37
        %v1535 = vand.u32 %v1508, 2147483648
        %v1536 = vor.u32 1.1754944e-38, %v1535
        %v1537 = vsel %vm1534, %v1536, %v1532
        %v1538 = vmul.f32 1.0, %v1537
        %v1539 = vadd.f32 %v1455, %v867
        %v1540 = vadd.f32 %v1457, %v867
        %v1541 = vmul.f32 %v1483, %v1539
        %v1542 = vmul.f32 %v1498, %v1540
        %v1543 = vadd.f32 %v809, %v1541
        %v1544 = vadd.f32 %v811, %v1542
        %v1545 = vtanh.pop %v1543
        %v1546 = vtanh.pop %v1544
        %v1547 = vsub.f32 1.0, %v1523
        %v1548 = vsub.f32 1.0, %v1538
        %v1549 = vmul.f32 %v1547, %v1545
        %v1550 = vmul.f32 %v1548, %v1546
        %v1551 = vmul.f32 %v1523, %v1414
        %v1552 = vmul.f32 %v1538, %v1415
        %v1553 = vadd.f32 %v1549, %v1551
        %v1554 = vadd.f32 %v1550, %v1552
        %v1555 = vpack.c.bf16 %v1554, %v1553
        %1556 = vmatpush.bf16.msra.mxu0 %v973
        %1557 = vmatpush.bf16.msra.mxu0 %v970
        %1558 = vmatpush.bf16.msra.mxu0 %v967
        %1559 = vmatpush.bf16.msra.mxu0 %v964
        %1560 = vmatpush.bf16.msra.mxu0 %v961
        %1561 = vmatpush.bf16.msra.mxu0 %v958
        %1562 = vmatpush.bf16.msra.mxu0 %v955
        %1563 = vmatpush.bf16.msra.mxu0 %v952
        %1564 = vmatmul.bf16.gmra.mxu0 %v1555
        %v1565 = vpop.f32.mrf.mxu0
        %v1566 = vadd.f32 0.0, %v1565
        %v1567 = vpop.f32.mrf.mxu0
        %v1568 = vadd.f32 0.0, %v1567
        %1569 = vdwg.mxu0
        %1570 = vmatpush.bf16.msra.mxu0 %v974
        %1571 = vmatpush.bf16.msra.mxu0 %v971
        %1572 = vmatpush.bf16.msra.mxu0 %v968
        %1573 = vmatpush.bf16.msra.mxu0 %v965
        %1574 = vmatpush.bf16.msra.mxu0 %v962
        %1575 = vmatpush.bf16.msra.mxu0 %v959
        %1576 = vmatpush.bf16.msra.mxu0 %v956
        %1577 = vmatpush.bf16.msra.mxu0 %v953
        %1578 = vmatmul.bf16.gmra.mxu0 %v1555
        %v1579 = vpop.f32.mrf.mxu0
        %v1580 = vadd.f32 0.0, %v1579
        %v1581 = vpop.f32.mrf.mxu0
        %v1582 = vadd.f32 0.0, %v1581
        %1583 = vdwg.mxu0
        %1584 = vmatpush.bf16.msra.mxu0 %v975
        %1585 = vmatpush.bf16.msra.mxu0 %v972
        %1586 = vmatpush.bf16.msra.mxu0 %v969
        %1587 = vmatpush.bf16.msra.mxu0 %v966
        %1588 = vmatpush.bf16.msra.mxu0 %v963
        %1589 = vmatpush.bf16.msra.mxu0 %v960
        %1590 = vmatpush.bf16.msra.mxu0 %v957
        %1591 = vmatpush.bf16.msra.mxu0 %v954
        %1592 = vmatmul.bf16.gmra.mxu0 %v1555
        %v1593 = vpop.f32.mrf.mxu0
        %v1594 = vadd.f32 0.0, %v1593
        %v1595 = vpop.f32.mrf.mxu0
        %v1596 = vadd.f32 0.0, %v1595
        %1597 = vdwg.mxu0
        %v1598 = vadd.f32 %v716, %v1566
        %v1599 = vadd.f32 %v718, %v1568
        %v1600 = vxor.u32 %v1598, 2147483648
        %v1601 = vxor.u32 %v1599, 2147483648
        %v1602 = vmul.f32 %v1600, 1.442695
        %v1603 = vpow.pop %v1602
        %v1604 = vmul.f32 %v1601, 1.442695
        %v1605 = vpow.pop %v1604
        %v1606 = vadd.f32 %v1603, 1.0
        %v1607 = vadd.f32 %v1605, 1.0
        %v1608 = vrcp.pop %v1606
        %v1609 = vmul.f32 %v1606, %v1608
        %v1610 = vsub.f32 1.0, %v1609
        %v1611 = vmul.f32 %v1608, %v1610
        %v1612 = vadd.f32 %v1608, %v1611
        %vm1613 = vweird.f32 %v1606
        %vm1614 = vweird.f32 %v1608
        %vm1615 = vmor %vm1613, %vm1614
        %v1616 = vsel %vm1615, %v1608, %v1612
        %v1617 = vand.u32 2147483647, %v1606
        %vm1618 = vcmp.eq.f32.partialorder %v1617, 8.507059e+37
        %v1619 = vand.u32 %v1606, 2147483648
        %v1620 = vor.u32 1.1754944e-38, %v1619
        %v1621 = vsel %vm1618, %v1620, %v1616
        %v1622 = vmul.f32 1.0, %v1621
        %v1623 = vrcp.pop %v1607
        %v1624 = vmul.f32 %v1607, %v1623
        %v1625 = vsub.f32 1.0, %v1624
        %v1626 = vmul.f32 %v1623, %v1625
        %v1627 = vadd.f32 %v1623, %v1626
        %vm1628 = vweird.f32 %v1607
        %vm1629 = vweird.f32 %v1623
        %vm1630 = vmor %vm1628, %vm1629
        %v1631 = vsel %vm1630, %v1623, %v1627
        %v1632 = vand.u32 2147483647, %v1607
        %vm1633 = vcmp.eq.f32.partialorder %v1632, 8.507059e+37
        %v1634 = vand.u32 %v1607, 2147483648
        %v1635 = vor.u32 1.1754944e-38, %v1634
        %v1636 = vsel %vm1633, %v1635, %v1631
        %v1637 = vmul.f32 1.0, %v1636
        %v1638 = vadd.f32 %v765, %v1580
        %v1639 = vadd.f32 %v767, %v1582
        %v1640 = vxor.u32 %v1638, 2147483648
        %v1641 = vxor.u32 %v1639, 2147483648
        %v1642 = vmul.f32 %v1640, 1.442695
        %v1643 = vpow.pop %v1642
        %v1644 = vmul.f32 %v1641, 1.442695
        %v1645 = vpow.pop %v1644
        %v1646 = vadd.f32 %v1643, 1.0
        %v1647 = vadd.f32 %v1645, 1.0
        %v1648 = vrcp.pop %v1646
        %v1649 = vmul.f32 %v1646, %v1648
        %v1650 = vsub.f32 1.0, %v1649
        %v1651 = vmul.f32 %v1648, %v1650
        %v1652 = vadd.f32 %v1648, %v1651
        %vm1653 = vweird.f32 %v1646
        %vm1654 = vweird.f32 %v1648
        %vm1655 = vmor %vm1653, %vm1654
        %v1656 = vsel %vm1655, %v1648, %v1652
        %v1657 = vand.u32 2147483647, %v1646
        %vm1658 = vcmp.eq.f32.partialorder %v1657, 8.507059e+37
        %v1659 = vand.u32 %v1646, 2147483648
        %v1660 = vor.u32 1.1754944e-38, %v1659
        %v1661 = vsel %vm1658, %v1660, %v1656
        %v1662 = vmul.f32 1.0, %v1661
        %v1663 = vrcp.pop %v1647
        %v1664 = vmul.f32 %v1647, %v1663
        %v1665 = vsub.f32 1.0, %v1664
        %v1666 = vmul.f32 %v1663, %v1665
        %v1667 = vadd.f32 %v1663, %v1666
        %vm1668 = vweird.f32 %v1647
        %vm1669 = vweird.f32 %v1663
        %vm1670 = vmor %vm1668, %vm1669
        %v1671 = vsel %vm1670, %v1663, %v1667
        %v1672 = vand.u32 2147483647, %v1647
        %vm1673 = vcmp.eq.f32.partialorder %v1672, 8.507059e+37
        %v1674 = vand.u32 %v1647, 2147483648
        %v1675 = vor.u32 1.1754944e-38, %v1674
        %v1676 = vsel %vm1673, %v1675, %v1671
        %v1677 = vmul.f32 1.0, %v1676
        %v1678 = vadd.f32 %v1594, %v867
        %v1679 = vadd.f32 %v1596, %v867
        %v1680 = vmul.f32 %v1622, %v1678
        %v1681 = vmul.f32 %v1637, %v1679
        %v1682 = vadd.f32 %v814, %v1680
        %v1683 = vadd.f32 %v816, %v1681
        %v1684 = vtanh.pop %v1682
        %v1685 = vtanh.pop %v1683
        %v1686 = vsub.f32 1.0, %v1662
        %v1687 = vsub.f32 1.0, %v1677
        %v1688 = vmul.f32 %v1686, %v1684
        %v1689 = vmul.f32 %v1687, %v1685
        %v1690 = vmul.f32 %v1662, %v1553
        %v1691 = vmul.f32 %v1677, %v1554
        %v1692 = vadd.f32 %v1688, %v1690
        %v1693 = vadd.f32 %v1689, %v1691
        %v1694 = vpack.c.bf16 %v1693, %v1692
        %1695 = vmatpush.bf16.msra.mxu0 %v973
        %1696 = vmatpush.bf16.msra.mxu0 %v970
        %1697 = vmatpush.bf16.msra.mxu0 %v967
        %1698 = vmatpush.bf16.msra.mxu0 %v964
        %1699 = vmatpush.bf16.msra.mxu0 %v961
        %1700 = vmatpush.bf16.msra.mxu0 %v958
        %1701 = vmatpush.bf16.msra.mxu0 %v955
        %1702 = vmatpush.bf16.msra.mxu0 %v952
        %1703 = vmatmul.bf16.gmra.mxu0 %v1694
        %v1704 = vpop.f32.mrf.mxu0
        %v1705 = vadd.f32 0.0, %v1704
        %v1706 = vpop.f32.mrf.mxu0
        %v1707 = vadd.f32 0.0, %v1706
        %1708 = vdwg.mxu0
        %1709 = vmatpush.bf16.msra.mxu0 %v974
        %1710 = vmatpush.bf16.msra.mxu0 %v971
        %1711 = vmatpush.bf16.msra.mxu0 %v968
        %1712 = vmatpush.bf16.msra.mxu0 %v965
        %1713 = vmatpush.bf16.msra.mxu0 %v962
        %1714 = vmatpush.bf16.msra.mxu0 %v959
        %1715 = vmatpush.bf16.msra.mxu0 %v956
        %1716 = vmatpush.bf16.msra.mxu0 %v953
        %1717 = vmatmul.bf16.gmra.mxu0 %v1694
        %v1718 = vpop.f32.mrf.mxu0
        %v1719 = vadd.f32 0.0, %v1718
        %v1720 = vpop.f32.mrf.mxu0
        %v1721 = vadd.f32 0.0, %v1720
        %1722 = vdwg.mxu0
        %1723 = vmatpush.bf16.msra.mxu0 %v975
        %1724 = vmatpush.bf16.msra.mxu0 %v972
        %1725 = vmatpush.bf16.msra.mxu0 %v969
        %1726 = vmatpush.bf16.msra.mxu0 %v966
        %1727 = vmatpush.bf16.msra.mxu0 %v963
        %1728 = vmatpush.bf16.msra.mxu0 %v960
        %1729 = vmatpush.bf16.msra.mxu0 %v957
        %1730 = vmatpush.bf16.msra.mxu0 %v954
        %1731 = vmatmul.bf16.gmra.mxu0 %v1694
        %v1732 = vpop.f32.mrf.mxu0
        %v1733 = vadd.f32 0.0, %v1732
        %v1734 = vpop.f32.mrf.mxu0
        %v1735 = vadd.f32 0.0, %v1734
        %1736 = vdwg.mxu0
        %v1737 = vadd.f32 %v721, %v1705
        %v1738 = vadd.f32 %v723, %v1707
        %v1739 = vxor.u32 %v1737, 2147483648
        %v1740 = vxor.u32 %v1738, 2147483648
        %v1741 = vmul.f32 %v1739, 1.442695
        %v1742 = vpow.pop %v1741
        %v1743 = vmul.f32 %v1740, 1.442695
        %v1744 = vpow.pop %v1743
        %v1745 = vadd.f32 %v1742, 1.0
        %v1746 = vadd.f32 %v1744, 1.0
        %v1747 = vrcp.pop %v1745
        %v1748 = vmul.f32 %v1745, %v1747
        %v1749 = vsub.f32 1.0, %v1748
        %v1750 = vmul.f32 %v1747, %v1749
        %v1751 = vadd.f32 %v1747, %v1750
        %vm1752 = vweird.f32 %v1745
        %vm1753 = vweird.f32 %v1747
        %vm1754 = vmor %vm1752, %vm1753
        %v1755 = vsel %vm1754, %v1747, %v1751
        %v1756 = vand.u32 2147483647, %v1745
        %vm1757 = vcmp.eq.f32.partialorder %v1756, 8.507059e+37
        %v1758 = vand.u32 %v1745, 2147483648
        %v1759 = vor.u32 1.1754944e-38, %v1758
        %v1760 = vsel %vm1757, %v1759, %v1755
        %v1761 = vmul.f32 1.0, %v1760
        %v1762 = vrcp.pop %v1746
        %v1763 = vmul.f32 %v1746, %v1762
        %v1764 = vsub.f32 1.0, %v1763
        %v1765 = vmul.f32 %v1762, %v1764
        %v1766 = vadd.f32 %v1762, %v1765
        %vm1767 = vweird.f32 %v1746
        %vm1768 = vweird.f32 %v1762
        %vm1769 = vmor %vm1767, %vm1768
        %v1770 = vsel %vm1769, %v1762, %v1766
        %v1771 = vand.u32 2147483647, %v1746
        %vm1772 = vcmp.eq.f32.partialorder %v1771, 8.507059e+37
        %v1773 = vand.u32 %v1746, 2147483648
        %v1774 = vor.u32 1.1754944e-38, %v1773
        %v1775 = vsel %vm1772, %v1774, %v1770
        %v1776 = vmul.f32 1.0, %v1775
        %v1777 = vadd.f32 %v770, %v1719
        %v1778 = vadd.f32 %v772, %v1721
        %v1779 = vxor.u32 %v1777, 2147483648
        %v1780 = vxor.u32 %v1778, 2147483648
        %v1781 = vmul.f32 %v1779, 1.442695
        %v1782 = vpow.pop %v1781
        %v1783 = vmul.f32 %v1780, 1.442695
        %v1784 = vpow.pop %v1783
        %v1785 = vadd.f32 %v1782, 1.0
        %v1786 = vadd.f32 %v1784, 1.0
        %v1787 = vrcp.pop %v1785
        %v1788 = vmul.f32 %v1785, %v1787
        %v1789 = vsub.f32 1.0, %v1788
        %v1790 = vmul.f32 %v1787, %v1789
        %v1791 = vadd.f32 %v1787, %v1790
        %vm1792 = vweird.f32 %v1785
        %vm1793 = vweird.f32 %v1787
        %vm1794 = vmor %vm1792, %vm1793
        %v1795 = vsel %vm1794, %v1787, %v1791
        %v1796 = vand.u32 2147483647, %v1785
        %vm1797 = vcmp.eq.f32.partialorder %v1796, 8.507059e+37
        %v1798 = vand.u32 %v1785, 2147483648
        %v1799 = vor.u32 1.1754944e-38, %v1798
        %v1800 = vsel %vm1797, %v1799, %v1795
        %v1801 = vmul.f32 1.0, %v1800
        %v1802 = vrcp.pop %v1786
        %v1803 = vmul.f32 %v1786, %v1802
        %v1804 = vsub.f32 1.0, %v1803
        %v1805 = vmul.f32 %v1802, %v1804
        %v1806 = vadd.f32 %v1802, %v1805
        %vm1807 = vweird.f32 %v1786
        %vm1808 = vweird.f32 %v1802
        %vm1809 = vmor %vm1807, %vm1808
        %v1810 = vsel %vm1809, %v1802, %v1806
        %v1811 = vand.u32 2147483647, %v1786
        %vm1812 = vcmp.eq.f32.partialorder %v1811, 8.507059e+37
        %v1813 = vand.u32 %v1786, 2147483648
        %v1814 = vor.u32 1.1754944e-38, %v1813
        %v1815 = vsel %vm1812, %v1814, %v1810
        %v1816 = vmul.f32 1.0, %v1815
        %v1817 = vadd.f32 %v1733, %v867
        %v1818 = vadd.f32 %v1735, %v867
        %v1819 = vmul.f32 %v1761, %v1817
        %v1820 = vmul.f32 %v1776, %v1818
        %v1821 = vadd.f32 %v819, %v1819
        %v1822 = vadd.f32 %v821, %v1820
        %v1823 = vtanh.pop %v1821
        %v1824 = vtanh.pop %v1822
        %v1825 = vsub.f32 1.0, %v1801
        %v1826 = vsub.f32 1.0, %v1816
        %v1827 = vmul.f32 %v1825, %v1823
        %v1828 = vmul.f32 %v1826, %v1824
        %v1829 = vmul.f32 %v1801, %v1692
        %v1830 = vmul.f32 %v1816, %v1693
        %v1831 = vadd.f32 %v1827, %v1829
        %v1832 = vadd.f32 %v1828, %v1830
        %v1833 = vpack.c.bf16 %v1832, %v1831
        %1834 = vmatpush.bf16.msra.mxu0 %v973
        %1835 = vmatpush.bf16.msra.mxu0 %v970
        %1836 = vmatpush.bf16.msra.mxu0 %v967
        %1837 = vmatpush.bf16.msra.mxu0 %v964
        %1838 = vmatpush.bf16.msra.mxu0 %v961
        %1839 = vmatpush.bf16.msra.mxu0 %v958
        %1840 = vmatpush.bf16.msra.mxu0 %v955
        %1841 = vmatpush.bf16.msra.mxu0 %v952
        %1842 = vmatmul.bf16.gmra.mxu0 %v1833
        %v1843 = vpop.f32.mrf.mxu0
        %v1844 = vadd.f32 0.0, %v1843
        %v1845 = vpop.f32.mrf.mxu0
        %v1846 = vadd.f32 0.0, %v1845
        %1847 = vdwg.mxu0
        %1848 = vmatpush.bf16.msra.mxu0 %v974
        %1849 = vmatpush.bf16.msra.mxu0 %v971
        %1850 = vmatpush.bf16.msra.mxu0 %v968
        %1851 = vmatpush.bf16.msra.mxu0 %v965
        %1852 = vmatpush.bf16.msra.mxu0 %v962
        %1853 = vmatpush.bf16.msra.mxu0 %v959
        %1854 = vmatpush.bf16.msra.mxu0 %v956
        %1855 = vmatpush.bf16.msra.mxu0 %v953
        %1856 = vmatmul.bf16.gmra.mxu0 %v1833
        %v1857 = vpop.f32.mrf.mxu0
        %v1858 = vadd.f32 0.0, %v1857
        %v1859 = vpop.f32.mrf.mxu0
        %v1860 = vadd.f32 0.0, %v1859
        %1861 = vdwg.mxu0
        %1862 = vmatpush.bf16.msra.mxu0 %v975
        %1863 = vmatpush.bf16.msra.mxu0 %v972
        %1864 = vmatpush.bf16.msra.mxu0 %v969
        %1865 = vmatpush.bf16.msra.mxu0 %v966
        %1866 = vmatpush.bf16.msra.mxu0 %v963
        %1867 = vmatpush.bf16.msra.mxu0 %v960
        %1868 = vmatpush.bf16.msra.mxu0 %v957
        %1869 = vmatpush.bf16.msra.mxu0 %v954
        %1870 = vmatmul.bf16.gmra.mxu0 %v1833
        %v1871 = vpop.f32.mrf.mxu0
        %v1872 = vadd.f32 0.0, %v1871
        %v1873 = vpop.f32.mrf.mxu0
        %v1874 = vadd.f32 0.0, %v1873
        %1875 = vdwg.mxu0
        %v1876 = vadd.f32 %v726, %v1844
        %v1877 = vadd.f32 %v728, %v1846
        %v1878 = vxor.u32 %v1876, 2147483648
        %v1879 = vxor.u32 %v1877, 2147483648
        %v1880 = vmul.f32 %v1878, 1.442695
        %v1881 = vpow.pop %v1880
        %v1882 = vmul.f32 %v1879, 1.442695
        %v1883 = vpow.pop %v1882
        %v1884 = vadd.f32 %v1881, 1.0
        %v1885 = vadd.f32 %v1883, 1.0
        %v1886 = vrcp.pop %v1884
        %v1887 = vmul.f32 %v1884, %v1886
        %v1888 = vsub.f32 1.0, %v1887
        %v1889 = vmul.f32 %v1886, %v1888
        %v1890 = vadd.f32 %v1886, %v1889
        %vm1891 = vweird.f32 %v1884
        %vm1892 = vweird.f32 %v1886
        %vm1893 = vmor %vm1891, %vm1892
        %v1894 = vsel %vm1893, %v1886, %v1890
        %v1895 = vand.u32 2147483647, %v1884
        %vm1896 = vcmp.eq.f32.partialorder %v1895, 8.507059e+37
        %v1897 = vand.u32 %v1884, 2147483648
        %v1898 = vor.u32 1.1754944e-38, %v1897
        %v1899 = vsel %vm1896, %v1898, %v1894
        %v1900 = vmul.f32 1.0, %v1899
        %v1901 = vrcp.pop %v1885
        %v1902 = vmul.f32 %v1885, %v1901
        %v1903 = vsub.f32 1.0, %v1902
        %v1904 = vmul.f32 %v1901, %v1903
        %v1905 = vadd.f32 %v1901, %v1904
        %vm1906 = vweird.f32 %v1885
        %vm1907 = vweird.f32 %v1901
        %vm1908 = vmor %vm1906, %vm1907
        %v1909 = vsel %vm1908, %v1901, %v1905
        %v1910 = vand.u32 2147483647, %v1885
        %vm1911 = vcmp.eq.f32.partialorder %v1910, 8.507059e+37
        %v1912 = vand.u32 %v1885, 2147483648
        %v1913 = vor.u32 1.1754944e-38, %v1912
        %v1914 = vsel %vm1911, %v1913, %v1909
        %v1915 = vmul.f32 1.0, %v1914
        %v1916 = vadd.f32 %v775, %v1858
        %v1917 = vadd.f32 %v777, %v1860
        %v1918 = vxor.u32 %v1916, 2147483648
        %v1919 = vxor.u32 %v1917, 2147483648
        %v1920 = vmul.f32 %v1918, 1.442695
        %v1921 = vpow.pop %v1920
        %v1922 = vmul.f32 %v1919, 1.442695
        %v1923 = vpow.pop %v1922
        %v1924 = vadd.f32 %v1921, 1.0
        %v1925 = vadd.f32 %v1923, 1.0
        %v1926 = vrcp.pop %v1924
        %v1927 = vmul.f32 %v1924, %v1926
        %v1928 = vsub.f32 1.0, %v1927
        %v1929 = vmul.f32 %v1926, %v1928
        %v1930 = vadd.f32 %v1926, %v1929
        %vm1931 = vweird.f32 %v1924
        %vm1932 = vweird.f32 %v1926
        %vm1933 = vmor %vm1931, %vm1932
        %v1934 = vsel %vm1933, %v1926, %v1930
        %v1935 = vand.u32 2147483647, %v1924
        %vm1936 = vcmp.eq.f32.partialorder %v1935, 8.507059e+37
        %v1937 = vand.u32 %v1924, 2147483648
        %v1938 = vor.u32 1.1754944e-38, %v1937
        %v1939 = vsel %vm1936, %v1938, %v1934
        %v1940 = vmul.f32 1.0, %v1939
        %v1941 = vrcp.pop %v1925
        %v1942 = vmul.f32 %v1925, %v1941
        %v1943 = vsub.f32 1.0, %v1942
        %v1944 = vmul.f32 %v1941, %v1943
        %v1945 = vadd.f32 %v1941, %v1944
        %vm1946 = vweird.f32 %v1925
        %vm1947 = vweird.f32 %v1941
        %vm1948 = vmor %vm1946, %vm1947
        %v1949 = vsel %vm1948, %v1941, %v1945
        %v1950 = vand.u32 2147483647, %v1925
        %vm1951 = vcmp.eq.f32.partialorder %v1950, 8.507059e+37
        %v1952 = vand.u32 %v1925, 2147483648
        %v1953 = vor.u32 1.1754944e-38, %v1952
        %v1954 = vsel %vm1951, %v1953, %v1949
        %v1955 = vmul.f32 1.0, %v1954
        %v1956 = vadd.f32 %v1872, %v867
        %v1957 = vadd.f32 %v1874, %v867
        %v1958 = vmul.f32 %v1900, %v1956
        %v1959 = vmul.f32 %v1915, %v1957
        %v1960 = vadd.f32 %v824, %v1958
        %v1961 = vadd.f32 %v826, %v1959
        %v1962 = vtanh.pop %v1960
        %v1963 = vtanh.pop %v1961
        %v1964 = vsub.f32 1.0, %v1940
        %v1965 = vsub.f32 1.0, %v1955
        %v1966 = vmul.f32 %v1964, %v1962
        %v1967 = vmul.f32 %v1965, %v1963
        %v1968 = vmul.f32 %v1940, %v1831
        %v1969 = vmul.f32 %v1955, %v1832
        %v1970 = vadd.f32 %v1966, %v1968
        %v1971 = vadd.f32 %v1967, %v1969
        %v1972 = vpack.c.bf16 %v1971, %v1970
        %1973 = vmatpush.bf16.msra.mxu0 %v973
        %1974 = vmatpush.bf16.msra.mxu0 %v970
        %1975 = vmatpush.bf16.msra.mxu0 %v967
        %1976 = vmatpush.bf16.msra.mxu0 %v964
        %1977 = vmatpush.bf16.msra.mxu0 %v961
        %1978 = vmatpush.bf16.msra.mxu0 %v958
        %1979 = vmatpush.bf16.msra.mxu0 %v955
        %1980 = vmatpush.bf16.msra.mxu0 %v952
        %1981 = vmatmul.bf16.gmra.mxu0 %v1972
        %v1982 = vpop.f32.mrf.mxu0
        %v1983 = vadd.f32 0.0, %v1982
        %v1984 = vpop.f32.mrf.mxu0
        %v1985 = vadd.f32 0.0, %v1984
        %1986 = vdwg.mxu0
        %1987 = vmatpush.bf16.msra.mxu0 %v974
        %1988 = vmatpush.bf16.msra.mxu0 %v971
        %1989 = vmatpush.bf16.msra.mxu0 %v968
        %1990 = vmatpush.bf16.msra.mxu0 %v965
        %1991 = vmatpush.bf16.msra.mxu0 %v962
        %1992 = vmatpush.bf16.msra.mxu0 %v959
        %1993 = vmatpush.bf16.msra.mxu0 %v956
        %1994 = vmatpush.bf16.msra.mxu0 %v953
        %1995 = vmatmul.bf16.gmra.mxu0 %v1972
        %v1996 = vpop.f32.mrf.mxu0
        %v1997 = vadd.f32 0.0, %v1996
        %v1998 = vpop.f32.mrf.mxu0
        %v1999 = vadd.f32 0.0, %v1998
        %2000 = vdwg.mxu0
        %2001 = vmatpush.bf16.msra.mxu0 %v975
        %2002 = vmatpush.bf16.msra.mxu0 %v972
        %2003 = vmatpush.bf16.msra.mxu0 %v969
        %2004 = vmatpush.bf16.msra.mxu0 %v966
        %2005 = vmatpush.bf16.msra.mxu0 %v963
        %2006 = vmatpush.bf16.msra.mxu0 %v960
        %2007 = vmatpush.bf16.msra.mxu0 %v957
        %2008 = vmatpush.bf16.msra.mxu0 %v954
        %2009 = vmatmul.bf16.gmra.mxu0 %v1972
        %v2010 = vpop.f32.mrf.mxu0
        %v2011 = vadd.f32 0.0, %v2010
        %v2012 = vpop.f32.mrf.mxu0
        %v2013 = vadd.f32 0.0, %v2012
        %2014 = vdwg.mxu0
        %v2015 = vadd.f32 %v731, %v1983
        %v2016 = vadd.f32 %v733, %v1985
        %v2017 = vxor.u32 %v2015, 2147483648
        %v2018 = vxor.u32 %v2016, 2147483648
        %v2019 = vmul.f32 %v2017, 1.442695
        %v2020 = vpow.pop %v2019
        %v2021 = vmul.f32 %v2018, 1.442695
        %v2022 = vpow.pop %v2021
        %v2023 = vadd.f32 %v2020, 1.0
        %v2024 = vadd.f32 %v2022, 1.0
        %v2025 = vrcp.pop %v2023
        %v2026 = vmul.f32 %v2023, %v2025
        %v2027 = vsub.f32 1.0, %v2026
        %v2028 = vmul.f32 %v2025, %v2027
        %v2029 = vadd.f32 %v2025, %v2028
        %vm2030 = vweird.f32 %v2023
        %vm2031 = vweird.f32 %v2025
        %vm2032 = vmor %vm2030, %vm2031
        %v2033 = vsel %vm2032, %v2025, %v2029
        %v2034 = vand.u32 2147483647, %v2023
        %vm2035 = vcmp.eq.f32.partialorder %v2034, 8.507059e+37
        %v2036 = vand.u32 %v2023, 2147483648
        %v2037 = vor.u32 1.1754944e-38, %v2036
        %v2038 = vsel %vm2035, %v2037, %v2033
        %v2039 = vmul.f32 1.0, %v2038
        %v2040 = vrcp.pop %v2024
        %v2041 = vmul.f32 %v2024, %v2040
        %v2042 = vsub.f32 1.0, %v2041
        %v2043 = vmul.f32 %v2040, %v2042
        %v2044 = vadd.f32 %v2040, %v2043
        %vm2045 = vweird.f32 %v2024
        %vm2046 = vweird.f32 %v2040
        %vm2047 = vmor %vm2045, %vm2046
        %v2048 = vsel %vm2047, %v2040, %v2044
        %v2049 = vand.u32 2147483647, %v2024
        %vm2050 = vcmp.eq.f32.partialorder %v2049, 8.507059e+37
        %v2051 = vand.u32 %v2024, 2147483648
        %v2052 = vor.u32 1.1754944e-38, %v2051
        %v2053 = vsel %vm2050, %v2052, %v2048
        %v2054 = vmul.f32 1.0, %v2053
        %v2055 = vadd.f32 %v780, %v1997
        %v2056 = vadd.f32 %v782, %v1999
        %v2057 = vxor.u32 %v2055, 2147483648
        %v2058 = vxor.u32 %v2056, 2147483648
        %v2059 = vmul.f32 %v2057, 1.442695
        %v2060 = vpow.pop %v2059
        %v2061 = vmul.f32 %v2058, 1.442695
        %v2062 = vpow.pop %v2061
        %v2063 = vadd.f32 %v2060, 1.0
        %v2064 = vadd.f32 %v2062, 1.0
        %v2065 = vrcp.pop %v2063
        %v2066 = vmul.f32 %v2063, %v2065
        %v2067 = vsub.f32 1.0, %v2066
        %v2068 = vmul.f32 %v2065, %v2067
        %v2069 = vadd.f32 %v2065, %v2068
        %vm2070 = vweird.f32 %v2063
        %vm2071 = vweird.f32 %v2065
        %vm2072 = vmor %vm2070, %vm2071
        %v2073 = vsel %vm2072, %v2065, %v2069
        %v2074 = vand.u32 2147483647, %v2063
        %vm2075 = vcmp.eq.f32.partialorder %v2074, 8.507059e+37
        %v2076 = vand.u32 %v2063, 2147483648
        %v2077 = vor.u32 1.1754944e-38, %v2076
        %v2078 = vsel %vm2075, %v2077, %v2073
        %v2079 = vmul.f32 1.0, %v2078
        %v2080 = vrcp.pop %v2064
        %v2081 = vmul.f32 %v2064, %v2080
        %v2082 = vsub.f32 1.0, %v2081
        %v2083 = vmul.f32 %v2080, %v2082
        %v2084 = vadd.f32 %v2080, %v2083
        %vm2085 = vweird.f32 %v2064
        %vm2086 = vweird.f32 %v2080
        %vm2087 = vmor %vm2085, %vm2086
        %v2088 = vsel %vm2087, %v2080, %v2084
        %v2089 = vand.u32 2147483647, %v2064
        %vm2090 = vcmp.eq.f32.partialorder %v2089, 8.507059e+37
        %v2091 = vand.u32 %v2064, 2147483648
        %v2092 = vor.u32 1.1754944e-38, %v2091
        %v2093 = vsel %vm2090, %v2092, %v2088
        %v2094 = vmul.f32 1.0, %v2093
        %v2095 = vadd.f32 %v2011, %v867
        %v2096 = vadd.f32 %v2013, %v867
        %v2097 = vmul.f32 %v2039, %v2095
        %v2098 = vmul.f32 %v2054, %v2096
        %v2099 = vadd.f32 %v829, %v2097
        %v2100 = vadd.f32 %v831, %v2098
        %v2101 = vtanh.pop %v2099
        %v2102 = vtanh.pop %v2100
        %v2103 = vsub.f32 1.0, %v2079
        %v2104 = vsub.f32 1.0, %v2094
        %v2105 = vmul.f32 %v2103, %v2101
        %v2106 = vmul.f32 %v2104, %v2102
        %v2107 = vmul.f32 %v2079, %v1970
        %v2108 = vmul.f32 %v2094, %v1971
        %v2109 = vadd.f32 %v2105, %v2107
        %v2110 = vadd.f32 %v2106, %v2108
        %2111 = vst [vmem:[#allocation2] sm:$0xff] %v2109
        %2112 = vst [vmem:[#allocation2 + $0x8] sm:$0xff] %v2110
        %p2113 = scmp.eq.s32.totalorder %s33, 1
        // Predicated region
        $region77: #{tpu_custom_call.1} parent=51 // pred_check
          %p2114 = pneg %p2113
        $region78: #{tpu_custom_call.1} parent=51 // pred_check_branch
          %2116 = sbr.rel (%p2114) target = $region80
        $region79: #{tpu_custom_call.1} parent=51 // pred_region
          %2117 = vst [vmem:[#allocation13] sm:$0xff] %v2109
          %2118 = vst [vmem:[#allocation13 + $0x8] sm:$0xff] %v2110
          %v2119 = vpack.c.bf16 %v2110, %v2109
          %v2120 = vld [vmem:[#allocation11] sm:$0xf]
          %v2121 = vld [vmem:[#allocation11 + $0x4] sm:$0xf]
          %v2122 = vld [vmem:[#allocation11 + $0x8] sm:$0xf]
          %v2123 = vld [vmem:[#allocation11 + $0xc] sm:$0xf]
          %v2124 = vld [vmem:[#allocation11 + $0x10] sm:$0xf]
          %v2125 = vld [vmem:[#allocation11 + $0x14] sm:$0xf]
          %v2126 = vld [vmem:[#allocation11 + $0x18] sm:$0xf]
          %v2127 = vld [vmem:[#allocation11 + $0x1c] sm:$0xf]
          %v2128 = vld [vmem:[#allocation11 + $0x20] sm:$0xf]
          %v2129 = vld [vmem:[#allocation11 + $0x24] sm:$0xf]
          %v2130 = vld [vmem:[#allocation11 + $0x28] sm:$0xf]
          %v2131 = vld [vmem:[#allocation11 + $0x2c] sm:$0xf]
          %v2132 = vld [vmem:[#allocation11 + $0x30] sm:$0xf]
          %v2133 = vld [vmem:[#allocation11 + $0x34] sm:$0xf]
          %v2134 = vld [vmem:[#allocation11 + $0x38] sm:$0xf]
          %v2135 = vld [vmem:[#allocation11 + $0x3c] sm:$0xf]
          %v2136 = vld [vmem:[%s7] sm:$0x1]
          %v2138 = vperm.slane %v2136, 0
          %v2156 = vunpack.c.l.b16 %v2120
          %v2157 = vunpack.c.l.b16 %v2121
          %v2158 = vunpack.c.l.b16 %v2122
          %v2159 = vunpack.c.l.b16 %v2123
          %v2160 = vunpack.c.l.b16 %v2124
          %v2161 = vunpack.c.l.b16 %v2125
          %v2162 = vunpack.c.l.b16 %v2126
          %v2163 = vunpack.c.l.b16 %v2127
          %v2164 = vunpack.c.l.b16 %v2128
          %v2165 = vunpack.c.l.b16 %v2129
          %v2166 = vunpack.c.l.b16 %v2130
          %v2167 = vunpack.c.l.b16 %v2131
          %v2168 = vunpack.c.l.b16 %v2132
          %v2169 = vunpack.c.l.b16 %v2133
          %v2170 = vunpack.c.l.b16 %v2134
          %v2171 = vunpack.c.l.b16 %v2135
          %v2172 = vpack.c.b16 %v2157, %v2156
          %v2173 = vpack.c.b16 %v2159, %v2158
          %v2174 = vpack.c.b16 %v2161, %v2160
          %v2175 = vpack.c.b16 %v2163, %v2162
          %v2176 = vpack.c.b16 %v2165, %v2164
          %v2177 = vpack.c.b16 %v2167, %v2166
          %v2178 = vpack.c.b16 %v2169, %v2168
          %v2179 = vpack.c.b16 %v2171, %v2170
          %2188 = vmatpush.bf16.msra.mxu0 %v2179
          %2189 = vmatpush.bf16.msra.mxu0 %v2178
          %2190 = vmatpush.bf16.msra.mxu0 %v2177
          %2191 = vmatpush.bf16.msra.mxu0 %v2176
          %2192 = vmatpush.bf16.msra.mxu0 %v2175
          %2193 = vmatpush.bf16.msra.mxu0 %v2174
          %2194 = vmatpush.bf16.msra.mxu0 %v2173
          %2195 = vmatpush.bf16.msra.mxu0 %v2172
          %2196 = vmatmul.bf16.gmra.mxu0 %v2119
          %v2197 = vpop.f32.mrf.mxu0
          %v2198 = vadd.f32 %v2138, %v2197
          %v2199 = vpop.f32.mrf.mxu0
          %v2200 = vadd.f32 %v2138, %v2199
          %2201 = vdwg.mxu0
          %v2202 = vxor.u32 %v2198, 2147483648
          %v2203 = vxor.u32 %v2200, 2147483648
          %v2204 = vmul.f32 %v2202, 1.442695
          %v2205 = vpow.pop %v2204
          %v2206 = vmul.f32 %v2203, 1.442695
          %v2207 = vpow.pop %v2206
          %v2208 = vadd.f32 %v2205, 1.0
          %v2209 = vadd.f32 %v2207, 1.0
          %v2210 = vrcp.pop %v2208
          %v2211 = vmul.f32 %v2208, %v2210
          %v2212 = vsub.f32 1.0, %v2211
          %v2213 = vmul.f32 %v2210, %v2212
          %v2214 = vadd.f32 %v2210, %v2213
          %vm2215 = vweird.f32 %v2208
          %vm2216 = vweird.f32 %v2210
          %vm2217 = vmor %vm2215, %vm2216
          %v2218 = vsel %vm2217, %v2210, %v2214
          %v2219 = vand.u32 2147483647, %v2208
          %vm2220 = vcmp.eq.f32.partialorder %v2219, 8.507059e+37
          %v2221 = vand.u32 %v2208, 2147483648
          %v2222 = vor.u32 1.1754944e-38, %v2221
          %v2223 = vsel %vm2220, %v2222, %v2218
          %v2224 = vmul.f32 1.0, %v2223
          %v2225 = vrcp.pop %v2209
          %v2226 = vmul.f32 %v2209, %v2225
          %v2227 = vsub.f32 1.0, %v2226
          %v2228 = vmul.f32 %v2225, %v2227
          %v2229 = vadd.f32 %v2225, %v2228
          %vm2230 = vweird.f32 %v2209
          %vm2231 = vweird.f32 %v2225
          %vm2232 = vmor %vm2230, %vm2231
          %v2233 = vsel %vm2232, %v2225, %v2229
          %v2234 = vand.u32 2147483647, %v2209
          %vm2235 = vcmp.eq.f32.partialorder %v2234, 8.507059e+37
          %v2236 = vand.u32 %v2209, 2147483648
          %v2237 = vor.u32 1.1754944e-38, %v2236
          %v2238 = vsel %vm2235, %v2237, %v2233
          %v2239 = vmul.f32 1.0, %v2238
          %2240 = vst [vmem:[#allocation12] sm:$0xff] %v2224
          %2241 = vst [vmem:[#allocation12 + $0x8] sm:$0xff] %v2239
        $region80: #{tpu_custom_call.1} parent=51 // pred_fallthru
          _
        // Predicated region
        $region81: #{tpu_custom_call.1} parent=51 // pred_check
          %p2242 = pneg %p238
        $region82: #{tpu_custom_call.1} parent=51 // pred_check_branch
          %2244 = sbr.rel (%p2242) target = $region84
        $region83: #{tpu_custom_call.1} parent=51 // pred_region
          %s2245 = smul.u32 2, %s32
          %2247 = vsyncadd [#allocation5], 0
          %s2248 = smul.addr %s2245, 8
          %s2249 = scalar_lea.hbm %s8, %s2248
          %s2250 = sshll.u32 [#allocation12], 4
          %s2251 = int_to_ptr.vmem [resolvable:$true] %s2250
          %s2252 = sshll.u32 %s2249, 4
          %s2253 = int_to_ptr.hbm [resolvable:$true] %s2252
          %2258 = dma.vmem_to_hbm [thread:$0]  %s2251, 256, %s2253, [#allocation5], 128, 128, 8
        $region84: #{tpu_custom_call.1} parent=51 // pred_fallthru
          _
        // Predicated region
        $region85: #{tpu_custom_call.1} parent=51 // pred_check
          %p2259 = pneg %p264
        $region86: #{tpu_custom_call.1} parent=51 // pred_check_branch
          %2261 = sbr.rel (%p2259) target = $region88
        $region87: #{tpu_custom_call.1} parent=51 // pred_region
          %s2262 = smul.u32 2, %s32
          %2264 = vsyncadd [#allocation14], 0
          %s2265 = smul.addr %s2262, 8
          %s2266 = scalar_lea.hbm %s9, %s2265
          %s2267 = sshll.u32 [#allocation13], 4
          %s2268 = int_to_ptr.vmem [resolvable:$true] %s2267
          %s2269 = sshll.u32 %s2266, 4
          %s2270 = int_to_ptr.hbm [resolvable:$true] %s2269
          %2275 = dma.vmem_to_hbm [thread:$0]  %s2268, 256, %s2270, [#allocation14], 128, 128, 8
        $region88: #{tpu_custom_call.1} parent=51 // pred_fallthru
          _
        // Predicated region
        $region89: #{tpu_custom_call.1} parent=51 // pred_check
          %p2276 = pneg %p238
        $region90: #{tpu_custom_call.1} parent=51 // pred_check_branch
          %2278 = sbr.rel (%p2276) target = $region92
        $region91: #{tpu_custom_call.1} parent=51 // pred_region
          %2280 = dma.done [#allocation5], 256
        $region92: #{tpu_custom_call.1} parent=51 // pred_fallthru
          _
        // Predicated region
        $region93: #{tpu_custom_call.1} parent=51 // pred_check
          %p2281 = pneg %p264
        $region94: #{tpu_custom_call.1} parent=51 // pred_check_branch
          %2283 = sbr.rel (%p2281) target = $region96
        $region95: #{tpu_custom_call.1} parent=51 // pred_region
          %2285 = dma.done [#allocation14], 256
        $region96: #{tpu_custom_call.1} parent=51 // pred_fallthru
          _
      $region52: #{tpu_custom_call.1} parent=5 // pred_fallthru
        _
      %p2286 = scmp.le.s32.totalorder 2, %s23
      // Predicated region
      $region97: #{tpu_custom_call.1} parent=5 // pred_check
        %p2287 = pneg %p2286
      $region98: #{tpu_custom_call.1} parent=5 // pred_check_branch
        %2289 = sbr.rel (%p2287) target = $region100
      $region99: #{tpu_custom_call.1} parent=5 // pred_region
        %s2290 = ssub.s32 %s23, 2
      $region100: #{tpu_custom_call.1} parent=5 // pred_fallthru
        _
    $region6: #{tpu_custom_call.1} parent=1 // loop_footer
      %s27 = sadd.s32 1, %s23
    $region7: #{tpu_custom_call.1} parent=1 // loop_footer_branch
      %22 = sbr.rel target = $region3
    $region8: #{tpu_custom_call.1} parent=1 // loop_exit
      _
    %2291 = vsyncpa [#allocation4], 1
    %s2292 = scalar_lea.sflag [#allocation4], 1
    %2293 = vsyncpa %s2292, 1
    %2294 = vsyncpa [#allocation7], 1
    %2295 = vsyncpa [#allocation10], 1
    %2296 = vsyncpa [#allocation5], 1
    %s2297 = scalar_lea.sflag [#allocation5], 1
    %2298 = vsyncpa %s2297, 1
    %2299 = vsyncpa [#allocation14], 1

</llo_original>
